<compile_context>
chip_gen: v7x
topology: tpu7x:2x2x1
jax: 0.10.0
libtpu: 0.0.40
codegen_flags: <defaults>
</compile_context>

<pallas_src>
import math
import numpy as np

import jax
import jax.numpy as jnp
from jax import lax
from jax.experimental import pallas as pl
from jax.experimental.pallas import tpu as pltpu

# ----------------------------- module constants -----------------------------
n_ancilla_qubits = 2
n_system_qubits = 2
num_layers = 2
total_qubits = n_system_qubits + n_ancilla_qubits          # 4
measurement_qubit = n_system_qubits - 1                    # wire 1
DIM_SYS = 2 ** n_system_qubits                             # 4
DIM_ANC = 2 ** n_ancilla_qubits                            # 4 (hidden dim)
DIM = 2 ** total_qubits                                    # 16
_BITPOS = total_qubits - 1 - measurement_qubit             # bit of wire 1 (from LSB) = 2


# --------------------- circuit unitary (plain numpy glue) -------------------
def _ry(theta):
    c, s = math.cos(theta / 2.0), math.sin(theta / 2.0)
    return np.array([[c, -s], [s, c]], dtype=np.float64)


def _embed_1q(gate, wire, n):
    out = np.array([[1.0]], dtype=np.float64)
    for w in range(n):
        out = np.kron(out, gate if w == wire else np.eye(2))
    return out


def _cnot(control, target, n):
    d = 2 ** n
    P = np.zeros((d, d), dtype=np.float64)
    for k in range(d):
        knew = k ^ (1 << (n - 1 - target)) if (k >> (n - 1 - control)) & 1 else k
        P[knew, k] = 1.0
    return P


def _basic_entangler(weights, n):
    """qml.BasicEntanglerLayers(weights, rotation=RY) as a (2^n, 2^n) real unitary."""
    U = np.eye(2 ** n, dtype=np.float64)
    for l in range(weights.shape[0]):
        for w in range(n):
            U = _embed_1q(_ry(float(weights[l, w])), w, n) @ U
        if n == 2:
            U = _cnot(0, 1, n) @ U
        elif n > 2:
            for w in range(n):
                U = _cnot(w, (w + 1) % n, n) @ U
    return U


def build_total_unitary(U_params, Udagger_params):
    Unp = np.asarray(jax.device_get(U_params), dtype=np.float64)
    Udnp = np.asarray(jax.device_get(Udagger_params), dtype=np.float64)
    U_ent = _basic_entangler(Unp, total_qubits)
    U_dis = _basic_entangler(np.flip(Udnp, axis=0), total_qubits)  # disentangling_unitary
    return U_dis @ U_ent                                           # (16, 16) real


# --------------------------- constant matrices -------------------------------
def _constant_matrices():
    # M = marg @ btile folded: h_tiled_next[k'] = sum_k probs[k] * [k%4 == k'%4]
    k = np.arange(DIM)
    Msym = ((k[:, None] & (DIM_ANC - 1)) == (k[None, :] & (DIM_ANC - 1))).astype(np.float64)
    # PauliZ diagonal on measurement qubit (wire 1), as a (1, 16) row
    z_row = (1.0 - 2.0 * ((k >> _BITPOS) & 1)).astype(np.float64).reshape(1, DIM)
    return Msym, z_row


# --------------------------------- kernel -----------------------------------
def qlstm_kernel(rep_ref, u_ref, m_ref, z_ref, out_ref, h_scr):
    """Serial quantum-LSTM recurrence over one sequence chunk.

    rep_ref: (T, 16, B)  pre-projected, normalized, kron-replicated inputs
    u_ref:   (16, 16)    U_total (psi = U @ joint)
    m_ref:   (16, 16)    folded marginalize + re-tile matrix
    z_ref:   (1, 16)     PauliZ diagonal of measurement qubit
    out_ref: (1, B)      final-timestep <Z> (written on last chunk only)
    h_scr:   (16, B)     VMEM scratch carrying tiled hidden state across chunks
    """
    c = pl.program_id(0)
    T = rep_ref.shape[0]
    B = rep_ref.shape[2]

    u = u_ref[...]          # (16, 16)
    m = m_ref[...]          # (16, 16)

    @pl.when(c == 0)
    def _():
        # h0 = e0 per batch element, tiled:  h_tiled[k, b] = 1 if k % 4 == 0 else 0
        k_idx = lax.broadcasted_iota(jnp.int32, (DIM, B), 0)
        h_scr[...] = ((k_idx & (DIM_ANC - 1)) == 0).astype(jnp.float32)

    def body(t, carry):
        h_tiled, _ = carry
        rep_t = rep_ref[t]                                         # (16, B)
        # joint = kron(input_state, h_prev), amplitude-embedding normalization
        joint = rep_t * h_tiled
        ssq = jnp.sum(joint * joint, axis=0, keepdims=True)        # (1, B)
        joint = joint * lax.rsqrt(jnp.maximum(ssq, 1e-30))
        # circuit evolution (real unitary)
        psi = jnp.dot(u, joint, preferred_element_type=jnp.float32)    # (16, B)
        probs = psi * psi
        # diag of reduced density matrix on ancilla, re-tiled for the next kron
        h_next = jnp.dot(m, probs, preferred_element_type=jnp.float32)  # (16, B)
        return (h_next, probs)

    probs0 = jnp.zeros((DIM, B), jnp.float32)
    unroll = True if T <= 32 else 8
    h_final, probs_last = lax.fori_loop(0, T, body, (h_scr[...], probs0), unroll=unroll)
    h_scr[...] = h_final

    @pl.when(c == pl.num_programs(0) - 1)
    def _():
        # <PauliZ> on the measurement qubit — only the last timestep matters.
        z = z_ref[...]                                             # (1, 16)
        out_ref[...] = jnp.dot(z, probs_last,
                               preferred_element_type=jnp.float32).astype(out_ref.dtype)


# -------------------------------- wrapper ------------------------------------
def _pick_seq_chunk(S, cap=128):
    if S <= cap:
        return S
    best = 1
    for c in range(1, cap + 1):
        if S % c == 0:
            best = c
    return best


def quantum_lstm_forward(x, U_params, Udagger_params, w_in, b_in):
    """x: (batch, seq_len, 1) -> (batch, 1); semantics of QuantumLSTM.forward."""
    B, S, _ = x.shape

    U_total = build_total_unitary(U_params, Udagger_params)
    Msym_np, z_np = _constant_matrices()

    # ---- h-independent prepass, vectorized over (seq, batch) — hoisted from the loop ----
    x_sb = jnp.transpose(x[..., 0], (1, 0)).astype(jnp.float32)          # (S, B)
    wcol = jnp.reshape(w_in.astype(jnp.float32), (1, DIM_SYS, 1))        # (1, 4, 1)
    bcol = jnp.reshape(b_in.astype(jnp.float32), (1, DIM_SYS, 1))        # (1, 4, 1)
    proj = x_sb[:, None, :] * wcol + bcol                                 # (S, 4, B)
    # faithful to torch: input_state / torch.norm(input_state + 1e-12)
    nrm = jnp.sqrt(jnp.sum((proj + 1e-12) ** 2, axis=1, keepdims=True))   # (S, 1, B)
    in_state = proj / nrm
    # kron replication: rep[t, 4*i + j, b] = in_state[t, i, b]
    rep_all = jnp.repeat(in_state, DIM_ANC, axis=1)                       # (S, 16, B)

    ut = jnp.asarray(U_total, dtype=jnp.float32)                          # (16, 16)
    m = jnp.asarray(Msym_np, dtype=jnp.float32)                           # (16, 16)
    z = jnp.asarray(z_np, dtype=jnp.float32)                              # (1, 16)

    chunk = _pick_seq_chunk(S)
    n_chunks = S // chunk

    grid_spec = pltpu.PrefetchScalarGridSpec(
        num_scalar_prefetch=0,
        grid=(n_chunks,),
        in_specs=[
            pl.BlockSpec((chunk, DIM, B), lambda c: (c, 0, 0)),
            pl.BlockSpec((DIM, DIM), lambda c: (0, 0)),
            pl.BlockSpec((DIM, DIM), lambda c: (0, 0)),
            pl.BlockSpec((1, DIM), lambda c: (0, 0)),
        ],
        out_specs=pl.BlockSpec((1, B), lambda c: (0, 0)),
        scratch_shapes=[pltpu.VMEM((DIM, B), jnp.float32)],
    )

    out = pl.pallas_call(
        qlstm_kernel,
        out_shape=jax.ShapeDtypeStruct((1, B), jnp.float32),
        grid_spec=grid_spec,
        compiler_params=pltpu.CompilerParams(dimension_semantics=("arbitrary",)),
    )(rep_all, ut, m, z)
    return jnp.transpose(out, (1, 0))                                     # (B, 1)


# --------------------------- numpy reference (f64) ---------------------------
def _reference_forward(x_np, U_total, w_np, b_np):
    Bn, Sn, _ = x_np.shape
    zdiag = np.array([1.0 - 2.0 * ((k >> _BITPOS) & 1) for k in range(DIM)], dtype=np.float64)
    out = np.zeros((Bn, 1), dtype=np.float64)
    for i in range(Bn):
        h = np.zeros(DIM_ANC, dtype=np.float64)
        h[0] = 1.0
        o = 0.0
        for t in range(Sn):
            proj = w_np[:, 0].astype(np.float64) * float(x_np[i, t, 0]) + b_np.astype(np.float64)
            in_state = proj / np.linalg.norm(proj + 1e-12)
            joint = np.kron(in_state, h)
            joint = joint / np.linalg.norm(joint)
            psi = U_total @ joint
            probs = psi ** 2
            h = probs.reshape(DIM_SYS, DIM_ANC).sum(axis=0)
            o = float(zdiag @ probs)
        out[i, 0] = o
    return out


# ---------------------------------- main -------------------------------------
if __name__ == "__main__":
    key = jax.random.PRNGKey(0)
    k_x, k_u, k_ud, k_w, k_b = jax.random.split(key, 5)

    batch, seq_len = 2, 8
    x = jax.random.normal(k_x, (batch, seq_len, 1), dtype=jnp.float32)

    # Deterministic parameter init (shapes from QuantumLSTMCell.__init__).
    U_params = jax.random.uniform(k_u, (num_layers, total_qubits), dtype=jnp.float32)
    Udagger_params = jax.random.uniform(k_ud, (num_layers, total_qubits), dtype=jnp.float32)
    w_in = jax.random.uniform(k_w, (DIM_SYS, 1), minval=-1.0, maxval=1.0,
                              dtype=jnp.float32)   # input_proj.weight (4, 1)
    b_in = jax.random.uniform(k_b, (DIM_SYS,), minval=-1.0, maxval=1.0,
                              dtype=jnp.float32)   # input_proj.bias (4,)
    # note: output_proj (Linear(4,1)) exists in the PyTorch module but is never used in
    # forward(), so it is intentionally omitted here.

    out = quantum_lstm_forward(x, U_params, Udagger_params, w_in, b_in)
    out = jax.block_until_ready(out)
    assert out.shape == (batch, 1)

    # self-check against a float64 numpy reference of the same forward semantics
    ref = _reference_forward(np.asarray(jax.device_get(x)),
                             build_total_unitary(U_params, Udagger_params),
                             np.asarray(jax.device_get(w_in)),
                             np.asarray(jax.device_get(b_in)))
    assert np.allclose(np.asarray(jax.device_get(out)), ref, atol=1e-3), (out, ref)

    print("KERNEL_OK")
</pallas_src>

<mosaic_0001>
module attributes {stable_mosaic.version = 11 : i64} {
  func.func @qlstm_kernel(%arg0: i32, %arg1: memref<8x16x2xf32, #tpu.memory_space<vmem>>, %arg2: memref<16x16xf32, #tpu.memory_space<vmem>>, %arg3: memref<16x16xf32, #tpu.memory_space<vmem>>, %arg4: memref<1x16xf32, #tpu.memory_space<vmem>>, %arg5: memref<1x2xf32, #tpu.memory_space<vmem>>, %arg6: memref<16x2xf32, #tpu.memory_space<vmem>>) attributes {dimension_semantics = [#tpu.dimension_semantics<arbitrary>], iteration_bounds = array<i64: 1>, scalar_prefetch = 0 : i64, scratch_operands = 1 : i64, tpu.core_type = #tpu.core_type<tc>, window_params = [{transform_indices = @transform_0, window_bounds = array<i64: 8, 16, 2>}, {pipeline_mode = #tpu.pipeline_mode<synchronous>, transform_indices = @transform_1, window_bounds = array<i64: 16, 16>}, {pipeline_mode = #tpu.pipeline_mode<synchronous>, transform_indices = @transform_2, window_bounds = array<i64: 16, 16>}, {pipeline_mode = #tpu.pipeline_mode<synchronous>, transform_indices = @transform_3, window_bounds = array<i64: 1, 16>}, {pipeline_mode = #tpu.pipeline_mode<synchronous>, transform_indices = @transform_4, window_bounds = array<i64: 1, 2>}]} {
    %c0 = arith.constant 0 : index
    %c0_0 = arith.constant 0 : index
    %0 = vector.load %arg2[%c0, %c0_0] : memref<16x16xf32, #tpu.memory_space<vmem>>, vector<16x16xf32>
    %c0_1 = arith.constant 0 : index
    %c0_2 = arith.constant 0 : index
    %1 = vector.load %arg3[%c0_1, %c0_2] : memref<16x16xf32, #tpu.memory_space<vmem>>, vector<16x16xf32>
    %c0_i32 = arith.constant 0 : i32
    %2 = arith.cmpi eq, %arg0, %c0_i32 : i32
    %3 = arith.extui %2 : i1 to i32
    %c0_i32_3 = arith.constant 0 : i32
    %4 = arith.cmpi ne, %3, %c0_i32_3 : i32
    scf.if %4 {
      %131 = tpu.iota {dimensions = array<i32: 0>} : vector<16x2xi32>
      %c3_i32_59 = arith.constant 3 : i32
      %132 = vector.broadcast %c3_i32_59 : i32 to vector<16x2xi32>
      %133 = arith.andi %131, %132 : vector<16x2xi32>
      %c0_i32_60 = arith.constant 0 : i32
      %134 = vector.broadcast %c0_i32_60 : i32 to vector<16x2xi32>
      %135 = arith.cmpi eq, %133, %134 : vector<16x2xi32>
      %136 = arith.extui %135 : vector<16x2xi1> to vector<16x2xi32>
      %137 = arith.sitofp %136 : vector<16x2xi32> to vector<16x2xf32>
      %c0_61 = arith.constant 0 : index
      %c0_62 = arith.constant 0 : index
      %138 = vector.load %arg6[%c0_61, %c0_62] : memref<16x2xf32, #tpu.memory_space<vmem>>, vector<16x2xf32>
      tpu.vector_store %arg6[%c0_61, %c0_62], %137 {strides = array<i32>} : memref<16x2xf32, #tpu.memory_space<vmem>>, vector<16x2xf32>,
    } else {
    }
    %cst = arith.constant 0.000000e+00 : f32
    %5 = vector.broadcast %cst : f32 to vector<16x2xf32>
    %c0_4 = arith.constant 0 : index
    %c0_5 = arith.constant 0 : index
    %6 = vector.load %arg6[%c0_4, %c0_5] : memref<16x2xf32, #tpu.memory_space<vmem>>, vector<16x2xf32>
    %c0_i32_6 = arith.constant 0 : i32
    %7 = arith.index_cast %c0_i32_6 : i32 to index
    %c0_7 = arith.constant 0 : index
    %c0_8 = arith.constant 0 : index
    %8 = vector.load %arg1[%7, %c0_7, %c0_8] : memref<8x16x2xf32, #tpu.memory_space<vmem>>, vector<1x16x2xf32>
    %9 = vector.shape_cast %8 : vector<1x16x2xf32> to vector<16x2xf32>
    %10 = arith.mulf %9, %6 : vector<16x2xf32>
    %11 = arith.mulf %10, %10 : vector<16x2xf32>
    %cst_9 = arith.constant dense<0.000000e+00> : vector<2xf32>
    %12 = vector.multi_reduction <add>, %11, %cst_9 [0] : vector<16x2xf32> to vector<2xf32>
    %13 = vector.shape_cast %12 : vector<2xf32> to vector<1x2xf32>
    %cst_10 = arith.constant 1.000000e-30 : f32
    %14 = vector.broadcast %cst_10 : f32 to vector<1x2xf32>
    %15 = arith.maximumf %13, %14 : vector<1x2xf32>
    %16 = math.rsqrt %15 : vector<1x2xf32>
    %17 = vector.broadcast %16 : vector<1x2xf32> to vector<16x2xf32>
    %18 = arith.mulf %10, %17 : vector<16x2xf32>
    %cst_11 = arith.constant dense<0.000000e+00> : vector<16x2xf32>
    %19 = tpu.matmul %0, %18, %cst_11 {dimension_numbers = #tpu.dot_dimension_numbers<[1], [0], [0], [1], [0, 0, 1, 1], [], []>} : vector<16x16xf32>, vector<16x2xf32>, vector<16x2xf32> -> vector<16x2xf32>
    %20 = arith.mulf %19, %19 : vector<16x2xf32>
    %cst_12 = arith.constant dense<0.000000e+00> : vector<16x2xf32>
    %21 = tpu.matmul %1, %20, %cst_12 {dimension_numbers = #tpu.dot_dimension_numbers<[1], [0], [0], [1], [0, 0, 1, 1], [], []>} : vector<16x16xf32>, vector<16x2xf32>, vector<16x2xf32> -> vector<16x2xf32>
    %c1_i32 = arith.constant 1 : i32
    %22 = arith.index_cast %c1_i32 : i32 to index
    %c0_13 = arith.constant 0 : index
    %c0_14 = arith.constant 0 : index
    %23 = vector.load %arg1[%22, %c0_13, %c0_14] : memref<8x16x2xf32, #tpu.memory_space<vmem>>, vector<1x16x2xf32>
    %24 = vector.shape_cast %23 : vector<1x16x2xf32> to vector<16x2xf32>
    %25 = arith.mulf %24, %21 : vector<16x2xf32>
    %26 = arith.mulf %25, %25 : vector<16x2xf32>
    %cst_15 = arith.constant dense<0.000000e+00> : vector<2xf32>
    %27 = vector.multi_reduction <add>, %26, %cst_15 [0] : vector<16x2xf32> to vector<2xf32>
    %28 = vector.shape_cast %27 : vector<2xf32> to vector<1x2xf32>
    %cst_16 = arith.constant 1.000000e-30 : f32
    %29 = vector.broadcast %cst_16 : f32 to vector<1x2xf32>
    %30 = arith.maximumf %28, %29 : vector<1x2xf32>
    %31 = math.rsqrt %30 : vector<1x2xf32>
    %32 = vector.broadcast %31 : vector<1x2xf32> to vector<16x2xf32>
    %33 = arith.mulf %25, %32 : vector<16x2xf32>
    %cst_17 = arith.constant dense<0.000000e+00> : vector<16x2xf32>
    %34 = tpu.matmul %0, %33, %cst_17 {dimension_numbers = #tpu.dot_dimension_numbers<[1], [0], [0], [1], [0, 0, 1, 1], [], []>} : vector<16x16xf32>, vector<16x2xf32>, vector<16x2xf32> -> vector<16x2xf32>
    %35 = arith.mulf %34, %34 : vector<16x2xf32>
    %cst_18 = arith.constant dense<0.000000e+00> : vector<16x2xf32>
    %36 = tpu.matmul %1, %35, %cst_18 {dimension_numbers = #tpu.dot_dimension_numbers<[1], [0], [0], [1], [0, 0, 1, 1], [], []>} : vector<16x16xf32>, vector<16x2xf32>, vector<16x2xf32> -> vector<16x2xf32>
    %c2_i32 = arith.constant 2 : i32
    %37 = arith.index_cast %c2_i32 : i32 to index
    %c0_19 = arith.constant 0 : index
    %c0_20 = arith.constant 0 : index
    %38 = vector.load %arg1[%37, %c0_19, %c0_20] : memref<8x16x2xf32, #tpu.memory_space<vmem>>, vector<1x16x2xf32>
    %39 = vector.shape_cast %38 : vector<1x16x2xf32> to vector<16x2xf32>
    %40 = arith.mulf %39, %36 : vector<16x2xf32>
    %41 = arith.mulf %40, %40 : vector<16x2xf32>
    %cst_21 = arith.constant dense<0.000000e+00> : vector<2xf32>
    %42 = vector.multi_reduction <add>, %41, %cst_21 [0] : vector<16x2xf32> to vector<2xf32>
    %43 = vector.shape_cast %42 : vector<2xf32> to vector<1x2xf32>
    %cst_22 = arith.constant 1.000000e-30 : f32
    %44 = vector.broadcast %cst_22 : f32 to vector<1x2xf32>
    %45 = arith.maximumf %43, %44 : vector<1x2xf32>
    %46 = math.rsqrt %45 : vector<1x2xf32>
    %47 = vector.broadcast %46 : vector<1x2xf32> to vector<16x2xf32>
    %48 = arith.mulf %40, %47 : vector<16x2xf32>
    %cst_23 = arith.constant dense<0.000000e+00> : vector<16x2xf32>
    %49 = tpu.matmul %0, %48, %cst_23 {dimension_numbers = #tpu.dot_dimension_numbers<[1], [0], [0], [1], [0, 0, 1, 1], [], []>} : vector<16x16xf32>, vector<16x2xf32>, vector<16x2xf32> -> vector<16x2xf32>
    %50 = arith.mulf %49, %49 : vector<16x2xf32>
    %cst_24 = arith.constant dense<0.000000e+00> : vector<16x2xf32>
    %51 = tpu.matmul %1, %50, %cst_24 {dimension_numbers = #tpu.dot_dimension_numbers<[1], [0], [0], [1], [0, 0, 1, 1], [], []>} : vector<16x16xf32>, vector<16x2xf32>, vector<16x2xf32> -> vector<16x2xf32>
    %c3_i32 = arith.constant 3 : i32
    %52 = arith.index_cast %c3_i32 : i32 to index
    %c0_25 = arith.constant 0 : index
    %c0_26 = arith.constant 0 : index
    %53 = vector.load %arg1[%52, %c0_25, %c0_26] : memref<8x16x2xf32, #tpu.memory_space<vmem>>, vector<1x16x2xf32>
    %54 = vector.shape_cast %53 : vector<1x16x2xf32> to vector<16x2xf32>
    %55 = arith.mulf %54, %51 : vector<16x2xf32>
    %56 = arith.mulf %55, %55 : vector<16x2xf32>
    %cst_27 = arith.constant dense<0.000000e+00> : vector<2xf32>
    %57 = vector.multi_reduction <add>, %56, %cst_27 [0] : vector<16x2xf32> to vector<2xf32>
    %58 = vector.shape_cast %57 : vector<2xf32> to vector<1x2xf32>
    %cst_28 = arith.constant 1.000000e-30 : f32
    %59 = vector.broadcast %cst_28 : f32 to vector<1x2xf32>
    %60 = arith.maximumf %58, %59 : vector<1x2xf32>
    %61 = math.rsqrt %60 : vector<1x2xf32>
    %62 = vector.broadcast %61 : vector<1x2xf32> to vector<16x2xf32>
    %63 = arith.mulf %55, %62 : vector<16x2xf32>
    %cst_29 = arith.constant dense<0.000000e+00> : vector<16x2xf32>
    %64 = tpu.matmul %0, %63, %cst_29 {dimension_numbers = #tpu.dot_dimension_numbers<[1], [0], [0], [1], [0, 0, 1, 1], [], []>} : vector<16x16xf32>, vector<16x2xf32>, vector<16x2xf32> -> vector<16x2xf32>
    %65 = arith.mulf %64, %64 : vector<16x2xf32>
    %cst_30 = arith.constant dense<0.000000e+00> : vector<16x2xf32>
    %66 = tpu.matmul %1, %65, %cst_30 {dimension_numbers = #tpu.dot_dimension_numbers<[1], [0], [0], [1], [0, 0, 1, 1], [], []>} : vector<16x16xf32>, vector<16x2xf32>, vector<16x2xf32> -> vector<16x2xf32>
    %c4_i32 = arith.constant 4 : i32
    %67 = arith.index_cast %c4_i32 : i32 to index
    %c0_31 = arith.constant 0 : index
    %c0_32 = arith.constant 0 : index
    %68 = vector.load %arg1[%67, %c0_31, %c0_32] : memref<8x16x2xf32, #tpu.memory_space<vmem>>, vector<1x16x2xf32>
    %69 = vector.shape_cast %68 : vector<1x16x2xf32> to vector<16x2xf32>
    %70 = arith.mulf %69, %66 : vector<16x2xf32>
    %71 = arith.mulf %70, %70 : vector<16x2xf32>
    %cst_33 = arith.constant dense<0.000000e+00> : vector<2xf32>
    %72 = vector.multi_reduction <add>, %71, %cst_33 [0] : vector<16x2xf32> to vector<2xf32>
    %73 = vector.shape_cast %72 : vector<2xf32> to vector<1x2xf32>
    %cst_34 = arith.constant 1.000000e-30 : f32
    %74 = vector.broadcast %cst_34 : f32 to vector<1x2xf32>
    %75 = arith.maximumf %73, %74 : vector<1x2xf32>
    %76 = math.rsqrt %75 : vector<1x2xf32>
    %77 = vector.broadcast %76 : vector<1x2xf32> to vector<16x2xf32>
    %78 = arith.mulf %70, %77 : vector<16x2xf32>
    %cst_35 = arith.constant dense<0.000000e+00> : vector<16x2xf32>
    %79 = tpu.matmul %0, %78, %cst_35 {dimension_numbers = #tpu.dot_dimension_numbers<[1], [0], [0], [1], [0, 0, 1, 1], [], []>} : vector<16x16xf32>, vector<16x2xf32>, vector<16x2xf32> -> vector<16x2xf32>
    %80 = arith.mulf %79, %79 : vector<16x2xf32>
    %cst_36 = arith.constant dense<0.000000e+00> : vector<16x2xf32>
    %81 = tpu.matmul %1, %80, %cst_36 {dimension_numbers = #tpu.dot_dimension_numbers<[1], [0], [0], [1], [0, 0, 1, 1], [], []>} : vector<16x16xf32>, vector<16x2xf32>, vector<16x2xf32> -> vector<16x2xf32>
    %c5_i32 = arith.constant 5 : i32
    %82 = arith.index_cast %c5_i32 : i32 to index
    %c0_37 = arith.constant 0 : index
    %c0_38 = arith.constant 0 : index
    %83 = vector.load %arg1[%82, %c0_37, %c0_38] : memref<8x16x2xf32, #tpu.memory_space<vmem>>, vector<1x16x2xf32>
    %84 = vector.shape_cast %83 : vector<1x16x2xf32> to vector<16x2xf32>
    %85 = arith.mulf %84, %81 : vector<16x2xf32>
    %86 = arith.mulf %85, %85 : vector<16x2xf32>
    %cst_39 = arith.constant dense<0.000000e+00> : vector<2xf32>
    %87 = vector.multi_reduction <add>, %86, %cst_39 [0] : vector<16x2xf32> to vector<2xf32>
    %88 = vector.shape_cast %87 : vector<2xf32> to vector<1x2xf32>
    %cst_40 = arith.constant 1.000000e-30 : f32
    %89 = vector.broadcast %cst_40 : f32 to vector<1x2xf32>
    %90 = arith.maximumf %88, %89 : vector<1x2xf32>
    %91 = math.rsqrt %90 : vector<1x2xf32>
    %92 = vector.broadcast %91 : vector<1x2xf32> to vector<16x2xf32>
    %93 = arith.mulf %85, %92 : vector<16x2xf32>
    %cst_41 = arith.constant dense<0.000000e+00> : vector<16x2xf32>
    %94 = tpu.matmul %0, %93, %cst_41 {dimension_numbers = #tpu.dot_dimension_numbers<[1], [0], [0], [1], [0, 0, 1, 1], [], []>} : vector<16x16xf32>, vector<16x2xf32>, vector<16x2xf32> -> vector<16x2xf32>
    %95 = arith.mulf %94, %94 : vector<16x2xf32>
    %cst_42 = arith.constant dense<0.000000e+00> : vector<16x2xf32>
    %96 = tpu.matmul %1, %95, %cst_42 {dimension_numbers = #tpu.dot_dimension_numbers<[1], [0], [0], [1], [0, 0, 1, 1], [], []>} : vector<16x16xf32>, vector<16x2xf32>, vector<16x2xf32> -> vector<16x2xf32>
    %c6_i32 = arith.constant 6 : i32
    %97 = arith.index_cast %c6_i32 : i32 to index
    %c0_43 = arith.constant 0 : index
    %c0_44 = arith.constant 0 : index
    %98 = vector.load %arg1[%97, %c0_43, %c0_44] : memref<8x16x2xf32, #tpu.memory_space<vmem>>, vector<1x16x2xf32>
    %99 = vector.shape_cast %98 : vector<1x16x2xf32> to vector<16x2xf32>
    %100 = arith.mulf %99, %96 : vector<16x2xf32>
    %101 = arith.mulf %100, %100 : vector<16x2xf32>
    %cst_45 = arith.constant dense<0.000000e+00> : vector<2xf32>
    %102 = vector.multi_reduction <add>, %101, %cst_45 [0] : vector<16x2xf32> to vector<2xf32>
    %103 = vector.shape_cast %102 : vector<2xf32> to vector<1x2xf32>
    %cst_46 = arith.constant 1.000000e-30 : f32
    %104 = vector.broadcast %cst_46 : f32 to vector<1x2xf32>
    %105 = arith.maximumf %103, %104 : vector<1x2xf32>
    %106 = math.rsqrt %105 : vector<1x2xf32>
    %107 = vector.broadcast %106 : vector<1x2xf32> to vector<16x2xf32>
    %108 = arith.mulf %100, %107 : vector<16x2xf32>
    %cst_47 = arith.constant dense<0.000000e+00> : vector<16x2xf32>
    %109 = tpu.matmul %0, %108, %cst_47 {dimension_numbers = #tpu.dot_dimension_numbers<[1], [0], [0], [1], [0, 0, 1, 1], [], []>} : vector<16x16xf32>, vector<16x2xf32>, vector<16x2xf32> -> vector<16x2xf32>
    %110 = arith.mulf %109, %109 : vector<16x2xf32>
    %cst_48 = arith.constant dense<0.000000e+00> : vector<16x2xf32>
    %111 = tpu.matmul %1, %110, %cst_48 {dimension_numbers = #tpu.dot_dimension_numbers<[1], [0], [0], [1], [0, 0, 1, 1], [], []>} : vector<16x16xf32>, vector<16x2xf32>, vector<16x2xf32> -> vector<16x2xf32>
    %c7_i32 = arith.constant 7 : i32
    %112 = arith.index_cast %c7_i32 : i32 to index
    %c0_49 = arith.constant 0 : index
    %c0_50 = arith.constant 0 : index
    %113 = vector.load %arg1[%112, %c0_49, %c0_50] : memref<8x16x2xf32, #tpu.memory_space<vmem>>, vector<1x16x2xf32>
    %114 = vector.shape_cast %113 : vector<1x16x2xf32> to vector<16x2xf32>
    %115 = arith.mulf %114, %111 : vector<16x2xf32>
    %116 = arith.mulf %115, %115 : vector<16x2xf32>
    %cst_51 = arith.constant dense<0.000000e+00> : vector<2xf32>
    %117 = vector.multi_reduction <add>, %116, %cst_51 [0] : vector<16x2xf32> to vector<2xf32>
    %118 = vector.shape_cast %117 : vector<2xf32> to vector<1x2xf32>
    %cst_52 = arith.constant 1.000000e-30 : f32
    %119 = vector.broadcast %cst_52 : f32 to vector<1x2xf32>
    %120 = arith.maximumf %118, %119 : vector<1x2xf32>
    %121 = math.rsqrt %120 : vector<1x2xf32>
    %122 = vector.broadcast %121 : vector<1x2xf32> to vector<16x2xf32>
    %123 = arith.mulf %115, %122 : vector<16x2xf32>
    %cst_53 = arith.constant dense<0.000000e+00> : vector<16x2xf32>
    %124 = tpu.matmul %0, %123, %cst_53 {dimension_numbers = #tpu.dot_dimension_numbers<[1], [0], [0], [1], [0, 0, 1, 1], [], []>} : vector<16x16xf32>, vector<16x2xf32>, vector<16x2xf32> -> vector<16x2xf32>
    %125 = arith.mulf %124, %124 : vector<16x2xf32>
    %cst_54 = arith.constant dense<0.000000e+00> : vector<16x2xf32>
    %126 = tpu.matmul %1, %125, %cst_54 {dimension_numbers = #tpu.dot_dimension_numbers<[1], [0], [0], [1], [0, 0, 1, 1], [], []>} : vector<16x16xf32>, vector<16x2xf32>, vector<16x2xf32> -> vector<16x2xf32>
    %c8_i32 = arith.constant 8 : i32
    %c0_55 = arith.constant 0 : index
    %c0_56 = arith.constant 0 : index
    %127 = vector.load %arg6[%c0_55, %c0_56] : memref<16x2xf32, #tpu.memory_space<vmem>>, vector<16x2xf32>
    tpu.vector_store %arg6[%c0_55, %c0_56], %126 {strides = array<i32>} : memref<16x2xf32, #tpu.memory_space<vmem>>, vector<16x2xf32>,
    %c0_i32_57 = arith.constant 0 : i32
    %128 = arith.cmpi eq, %arg0, %c0_i32_57 : i32
    %129 = arith.extui %128 : i1 to i32
    %c0_i32_58 = arith.constant 0 : i32
    %130 = arith.cmpi ne, %129, %c0_i32_58 : i32
    scf.if %130 {
      %c0_59 = arith.constant 0 : index
      %c0_60 = arith.constant 0 : index
      %131 = vector.load %arg4[%c0_59, %c0_60] : memref<1x16xf32, #tpu.memory_space<vmem>>, vector<1x16xf32>
      %cst_61 = arith.constant dense<0.000000e+00> : vector<1x2xf32>
      %132 = tpu.matmul %131, %125, %cst_61 {dimension_numbers = #tpu.dot_dimension_numbers<[1], [0], [0], [1], [0, 0, 1, 1], [], []>} : vector<1x16xf32>, vector<16x2xf32>, vector<1x2xf32> -> vector<1x2xf32>
      %c0_62 = arith.constant 0 : index
      %c0_63 = arith.constant 0 : index
      %133 = vector.load %arg5[%c0_62, %c0_63] : memref<1x2xf32, #tpu.memory_space<vmem>>, vector<1x2xf32>
      tpu.vector_store %arg5[%c0_62, %c0_63], %132 {strides = array<i32>} : memref<1x2xf32, #tpu.memory_space<vmem>>, vector<1x2xf32>,
    } else {
    }
    return
  }
  func.func @transform_0(%arg0: i32) -> (i32, i32, i32) {
    %c0_i32 = arith.constant 0 : i32
    %c0_i32_0 = arith.constant 0 : i32
    %c0_i32_1 = arith.constant 0 : i32
    return %arg0, %c0_i32, %c0_i32_0 : i32, i32, i32
  }
  func.func @transform_1(%arg0: i32) -> (i32, i32) {
    %c0_i32 = arith.constant 0 : i32
    %c0_i32_0 = arith.constant 0 : i32
    %c0_i32_1 = arith.constant 0 : i32
    return %c0_i32, %c0_i32_0 : i32, i32
  }
  func.func @transform_2(%arg0: i32) -> (i32, i32) {
    %c0_i32 = arith.constant 0 : i32
    %c0_i32_0 = arith.constant 0 : i32
    %c0_i32_1 = arith.constant 0 : i32
    return %c0_i32, %c0_i32_0 : i32, i32
  }
  func.func @transform_3(%arg0: i32) -> (i32, i32) {
    %c0_i32 = arith.constant 0 : i32
    %c0_i32_0 = arith.constant 0 : i32
    %c0_i32_1 = arith.constant 0 : i32
    return %c0_i32, %c0_i32_0 : i32, i32
  }
  func.func @transform_4(%arg0: i32) -> (i32, i32) {
    %c0_i32 = arith.constant 0 : i32
    %c0_i32_0 = arith.constant 0 : i32
    %c0_i32_1 = arith.constant 0 : i32
    return %c0_i32, %c0_i32_0 : i32, i32
  }
}

</mosaic_0001>

<llo_original>
// kernel: tpu_custom_call.1
$region0: #{tpu_custom_call.1}
  #allocation0 [shape = 'u32[]', space=smem, size = 0x4, offset = 0x4, fixed_abs, tag = 'smem constant byte address 0x4 - core index']
  #allocation1 [shape = 'u32[144,128]{1,0:T(1,128)}', space=vmem, size = 0x12000, scoped, tag = 'internal scratch']
  #allocation2 [shape = 'f32[16,2]{1,0:T(8,128)}', space=vmem, size = 0x2000, scoped, tag = 'scratch operand']
  %s0 = inlined_call_operand.vmem [shape: f32[8,16,2], index: 0, kind: input, shape index: {}]
  %s1 = inlined_call_operand.vmem [shape: f32[16,16], index: 1, kind: input, shape index: {}]
  %s2 = inlined_call_operand.vmem [shape: f32[16,16], index: 2, kind: input, shape index: {}]
  %s3 = inlined_call_operand.vmem [shape: f32[1,16], index: 3, kind: input, shape index: {}]
  %s4 = inlined_call_operand.hbm [shape: f32[1,2], index: 4, kind: output, shape index: {}]
  %s5 = sld [smem:[#allocation0]]
  $region34: #{tpu_custom_call.1} parent=0
    _
  %s7 = ssub.s32 1, %s5
  %s8 = scalar_select 0, %s7, %s5
  $region1: #{tpu_custom_call.1} parent=0
    #allocation3 [shape = 'u8[512]{0}', space=vmem, size = 0x400, scoped, tag = 'output window, operand 0, single buffered']
    #allocation4 [shape = 's32[1]{0}', space=sflag, size = 0x4, scoped, tag = 'scoped memory for tpu_custom_call.1']
    %9 = vsyncpa [#allocation4], 0
    // Predicated region
    $region2: #{tpu_custom_call.1} parent=1 // pred_check
      _
    $region3: #{tpu_custom_call.1} parent=1 // pred_check_branch
      %11 = sbr.rel (0) target = $region5
    $region4: #{tpu_custom_call.1} parent=1 // pred_region
      _
    $region5: #{tpu_custom_call.1} parent=1 // pred_fallthru
      _
    // Predicated region
    $region6: #{tpu_custom_call.1} parent=1 // pred_check
      _
    $region7: #{tpu_custom_call.1} parent=1 // pred_check_branch
      %13 = sbr.rel (0) target = $region9
    $region8: #{tpu_custom_call.1} parent=1 // pred_region
      _
    $region9: #{tpu_custom_call.1} parent=1 // pred_fallthru
      _
    // Predicated region
    $region10: #{tpu_custom_call.1} parent=1 // pred_check
      _
    $region11: #{tpu_custom_call.1} parent=1 // pred_check_branch
      %15 = sbr.rel (0) target = $region13
    $region12: #{tpu_custom_call.1} parent=1 // pred_region
      _
    $region13: #{tpu_custom_call.1} parent=1 // pred_fallthru
      _
    // Predicated region
    $region14: #{tpu_custom_call.1} parent=1 // pred_check
      _
    $region15: #{tpu_custom_call.1} parent=1 // pred_check_branch
      %17 = sbr.rel (0) target = $region17
    $region16: #{tpu_custom_call.1} parent=1 // pred_region
      _
    $region17: #{tpu_custom_call.1} parent=1 // pred_fallthru
      _
    %v18 = vld [vmem:[%s1] sm:$0xff]
    %v19 = vld [vmem:[%s1 + $0x8] sm:$0xff]
    %v20 = vld [vmem:[%s2] sm:$0xff]
    %v21 = vld [vmem:[%s2 + $0x8] sm:$0xff]
    %p22 = scmp.eq.s32.totalorder 0, 0
    // Predicated region
    $region18: #{tpu_custom_call.1} parent=1 // pred_check
      %p23 = pneg %p22
    $region19: #{tpu_custom_call.1} parent=1 // pred_check_branch
      %25 = sbr.rel (%p23) target = $region21
    $region20: #{tpu_custom_call.1} parent=1 // pred_region
      %v26 = vlaneseq
      %v27 = vshrl.u32 %v26, 7
      %v28 = vadd.s32 %v27, 8
      %v29 = vand.u32 %v27, 3
      %v30 = vand.u32 %v28, 3
      %vm31 = vcmp.eq.s32.totalorder %v29, 0
      %vm32 = vcmp.eq.s32.totalorder %v30, 0
      %v33 = vsel %vm31, 1, 0
      %v34 = vsel %vm32, 1, 0
      %v35 = vcvt.s32.f32 %v33
      %v36 = vcvt.s32.f32 %v34
      %vm37 = vcmask 15360
      %38 = vst.msk [vmem:[#allocation2] sm:$0xff] %vm37, %v35
      %39 = vst.msk [vmem:[#allocation2 + $0x8] sm:$0xff] %vm37, %v36
    $region21: #{tpu_custom_call.1} parent=1 // pred_fallthru
      _
    %v40 = vld [vmem:[#allocation2] sm:$0xff]
    %v41 = vld [vmem:[#allocation2 + $0x8] sm:$0xff]
    %v42 = vld [vmem:[%s0] sm:$0xff]
    %v43 = vld [vmem:[%s0 + $0x8] sm:$0xff]
    %v44 = vmul.f32 %v42, %v40
    %v45 = vmul.f32 %v43, %v41
    %v46 = vmul.f32 %v44, %v44
    %v47 = vmul.f32 %v45, %v45
    %vm48 = vcmask 15360
    %v49 = vsel %vm48, %v46, 0.0
    %v50 = vsel %vm48, %v47, 0.0
    %v51 = vadd.f32 %v49, %v50
    %v52 = vrot.slane %v51, 4
    %v53 = vadd.f32 %v51, %v52
    %v54 = vrot.slane %v53, 2
    %v55 = vadd.f32 %v53, %v54
    %v56 = vrot.slane %v55, 1
    %v57 = vadd.f32 %v55, %v56
    %v58 = vmax.f32 %v57, 1e-30
    %v59 = vrsqrt.pop %v58
    %v60 = vmul.f32 %v44, %v59
    %v61 = vmul.f32 %v45, %v59
    %vm62 = vcmask 130048
    %v64 = vsel %vm62, %v18, 0
    %v67 = vsel %vm62, %v19, 0
    %69 = vmatprep.subr.mxu0 0.0
    %70 = vmatpush1.msra.mxu0 %v60
    %71 = vmatprep.subr.mxu0 0.0
    %72 = vmatpush1.msra.mxu0 %v61
    %73 = vmatprep.subr.mxu0 0.0
    %74 = vmatpush1.msra.mxu0 0.0
    %75 = vmatprep.subr.mxu0 0.0
    %76 = vmatpush1.msra.mxu0 0.0
    %77 = vmatprep.subr.mxu0 0.0
    %78 = vmatpush1.msra.mxu0 0.0
    %79 = vmatprep.subr.mxu0 0.0
    %80 = vmatpush1.msra.mxu0 0.0
    %81 = vmatprep.subr.mxu0 0.0
    %82 = vmatpush1.msra.mxu0 0.0
    %83 = vmatprep.subr.mxu0 0.0
    %84 = vmatpush1.msra.mxu0 0.0
    %85 = vmatprep.subr.mxu0 0.0
    %86 = vmatpush1.msra.mxu0 0.0
    %87 = vmatprep.subr.mxu0 0.0
    %88 = vmatpush1.msra.mxu0 0.0
    %89 = vmatprep.subr.mxu0 0.0
    %90 = vmatpush1.msra.mxu0 0.0
    %91 = vmatprep.subr.mxu0 0.0
    %92 = vmatpush1.msra.mxu0 0.0
    %93 = vmatprep.subr.mxu0 0.0
    %94 = vmatpush1.msra.mxu0 0.0
    %95 = vmatprep.subr.mxu0 0.0
    %96 = vmatpush1.msra.mxu0 0.0
    %97 = vmatprep.subr.mxu0 0.0
    %98 = vmatpush1.msra.mxu0 0.0
    %99 = vmatprep.subr.mxu0 0.0
    %100 = vmatpush1.msra.mxu0 0.0
    %101 = vmatprep.subr.mxu0 0.0
    %102 = vmatpush1.msra.mxu0 0.0
    %103 = vmatprep.subr.mxu0 0.0
    %104 = vmatpush1.msra.mxu0 0.0
    %105 = vmatprep.subr.mxu0 0.0
    %106 = vmatpush1.msra.mxu0 0.0
    %107 = vmatprep.subr.mxu0 0.0
    %108 = vmatpush1.msra.mxu0 0.0
    %109 = vmatprep.subr.mxu0 0.0
    %110 = vmatpush1.msra.mxu0 0.0
    %111 = vmatprep.subr.mxu0 0.0
    %112 = vmatpush1.msra.mxu0 0.0
    %113 = vmatprep.subr.mxu0 0.0
    %114 = vmatpush1.msra.mxu0 0.0
    %115 = vmatprep.subr.mxu0 0.0
    %116 = vmatpush1.msra.mxu0 0.0
    %117 = vmatprep.subr.mxu0 0.0
    %118 = vmatpush1.msra.mxu0 0.0
    %119 = vmatprep.subr.mxu0 0.0
    %120 = vmatpush1.msra.mxu0 0.0
    %121 = vmatprep.subr.mxu0 0.0
    %122 = vmatpush1.msra.mxu0 0.0
    %123 = vmatprep.subr.mxu0 0.0
    %124 = vmatpush1.msra.mxu0 0.0
    %125 = vmatprep.subr.mxu0 0.0
    %126 = vmatpush1.msra.mxu0 0.0
    %127 = vmatprep.subr.mxu0 0.0
    %128 = vmatpush1.msra.mxu0 0.0
    %129 = vmatprep.subr.mxu0 0.0
    %130 = vmatpush1.msra.mxu0 0.0
    %131 = vmatprep.subr.mxu0 0.0
    %132 = vmatpush1.msra.mxu0 0.0
    %133 = vmatprep.mubr.f32.mxu0 0.0
    %134 = vmatmul.mubr.f32.gmra.mrb[0].mxu0 %v64
    %v135 = vpop.f32.mrb[0].mxu0
    %v136 = vadd.f32 0.0, %v135
    %v137 = vpop.f32.mrb[0].mxu0
    %138 = vmatprep.mubr.f32.mxu0 0.0
    %139 = vmatmul.mubr.f32.gmra.mrb[0].mxu0 %v67
    %v140 = vpop.f32.mrb[0].mxu0
    %v141 = vadd.f32 0.0, %v140
    %v142 = vpop.f32.mrb[0].mxu0
    %143 = vdwg.mxu0
    %v144 = vmul.f32 %v136, %v136
    %v145 = vmul.f32 %v141, %v141
    %v147 = vsel %vm62, %v20, 0
    %v150 = vsel %vm62, %v21, 0
    %152 = vmatprep.subr.mxu0 0.0
    %153 = vmatpush1.msra.mxu0 %v144
    %154 = vmatprep.subr.mxu0 0.0
    %155 = vmatpush1.msra.mxu0 %v145
    %156 = vmatprep.subr.mxu0 0.0
    %157 = vmatpush1.msra.mxu0 0.0
    %158 = vmatprep.subr.mxu0 0.0
    %159 = vmatpush1.msra.mxu0 0.0
    %160 = vmatprep.subr.mxu0 0.0
    %161 = vmatpush1.msra.mxu0 0.0
    %162 = vmatprep.subr.mxu0 0.0
    %163 = vmatpush1.msra.mxu0 0.0
    %164 = vmatprep.subr.mxu0 0.0
    %165 = vmatpush1.msra.mxu0 0.0
    %166 = vmatprep.subr.mxu0 0.0
    %167 = vmatpush1.msra.mxu0 0.0
    %168 = vmatprep.subr.mxu0 0.0
    %169 = vmatpush1.msra.mxu0 0.0
    %170 = vmatprep.subr.mxu0 0.0
    %171 = vmatpush1.msra.mxu0 0.0
    %172 = vmatprep.subr.mxu0 0.0
    %173 = vmatpush1.msra.mxu0 0.0
    %174 = vmatprep.subr.mxu0 0.0
    %175 = vmatpush1.msra.mxu0 0.0
    %176 = vmatprep.subr.mxu0 0.0
    %177 = vmatpush1.msra.mxu0 0.0
    %178 = vmatprep.subr.mxu0 0.0
    %179 = vmatpush1.msra.mxu0 0.0
    %180 = vmatprep.subr.mxu0 0.0
    %181 = vmatpush1.msra.mxu0 0.0
    %182 = vmatprep.subr.mxu0 0.0
    %183 = vmatpush1.msra.mxu0 0.0
    %184 = vmatprep.subr.mxu0 0.0
    %185 = vmatpush1.msra.mxu0 0.0
    %186 = vmatprep.subr.mxu0 0.0
    %187 = vmatpush1.msra.mxu0 0.0
    %188 = vmatprep.subr.mxu0 0.0
    %189 = vmatpush1.msra.mxu0 0.0
    %190 = vmatprep.subr.mxu0 0.0
    %191 = vmatpush1.msra.mxu0 0.0
    %192 = vmatprep.subr.mxu0 0.0
    %193 = vmatpush1.msra.mxu0 0.0
    %194 = vmatprep.subr.mxu0 0.0
    %195 = vmatpush1.msra.mxu0 0.0
    %196 = vmatprep.subr.mxu0 0.0
    %197 = vmatpush1.msra.mxu0 0.0
    %198 = vmatprep.subr.mxu0 0.0
    %199 = vmatpush1.msra.mxu0 0.0
    %200 = vmatprep.subr.mxu0 0.0
    %201 = vmatpush1.msra.mxu0 0.0
    %202 = vmatprep.subr.mxu0 0.0
    %203 = vmatpush1.msra.mxu0 0.0
    %204 = vmatprep.subr.mxu0 0.0
    %205 = vmatpush1.msra.mxu0 0.0
    %206 = vmatprep.subr.mxu0 0.0
    %207 = vmatpush1.msra.mxu0 0.0
    %208 = vmatprep.subr.mxu0 0.0
    %209 = vmatpush1.msra.mxu0 0.0
    %210 = vmatprep.subr.mxu0 0.0
    %211 = vmatpush1.msra.mxu0 0.0
    %212 = vmatprep.subr.mxu0 0.0
    %213 = vmatpush1.msra.mxu0 0.0
    %214 = vmatprep.subr.mxu0 0.0
    %215 = vmatpush1.msra.mxu0 0.0
    %216 = vmatprep.mubr.f32.mxu0 0.0
    %217 = vmatmul.mubr.f32.gmra.mrb[0].mxu0 %v147
    %v218 = vpop.f32.mrb[0].mxu0
    %v219 = vadd.f32 0.0, %v218
    %v220 = vpop.f32.mrb[0].mxu0
    %221 = vmatprep.mubr.f32.mxu0 0.0
    %222 = vmatmul.mubr.f32.gmra.mrb[0].mxu0 %v150
    %v223 = vpop.f32.mrb[0].mxu0
    %v224 = vadd.f32 0.0, %v223
    %v225 = vpop.f32.mrb[0].mxu0
    %226 = vdwg.mxu0
    %s227 = scalar_lea.vmem %s0, 16
    %v228 = vld [vmem:[%s227] sm:$0xff]
    %v229 = vld [vmem:[%s227 + $0x8] sm:$0xff]
    %v230 = vmul.f32 %v228, %v219
    %v231 = vmul.f32 %v229, %v224
    %v232 = vmul.f32 %v230, %v230
    %v233 = vmul.f32 %v231, %v231
    %v234 = vsel %vm48, %v232, 0.0
    %v235 = vsel %vm48, %v233, 0.0
    %v236 = vadd.f32 %v234, %v235
    %v237 = vrot.slane %v236, 4
    %v238 = vadd.f32 %v236, %v237
    %v239 = vrot.slane %v238, 2
    %v240 = vadd.f32 %v238, %v239
    %v241 = vrot.slane %v240, 1
    %v242 = vadd.f32 %v240, %v241
    %v243 = vmax.f32 %v242, 1e-30
    %v244 = vrsqrt.pop %v243
    %v245 = vmul.f32 %v230, %v244
    %v246 = vmul.f32 %v231, %v244
    %247 = vmatprep.subr.mxu0 0.0
    %248 = vmatpush1.msra.mxu0 %v245
    %249 = vmatprep.subr.mxu0 0.0
    %250 = vmatpush1.msra.mxu0 %v246
    %251 = vmatprep.subr.mxu0 0.0
    %252 = vmatpush1.msra.mxu0 0.0
    %253 = vmatprep.subr.mxu0 0.0
    %254 = vmatpush1.msra.mxu0 0.0
    %255 = vmatprep.subr.mxu0 0.0
    %256 = vmatpush1.msra.mxu0 0.0
    %257 = vmatprep.subr.mxu0 0.0
    %258 = vmatpush1.msra.mxu0 0.0
    %259 = vmatprep.subr.mxu0 0.0
    %260 = vmatpush1.msra.mxu0 0.0
    %261 = vmatprep.subr.mxu0 0.0
    %262 = vmatpush1.msra.mxu0 0.0
    %263 = vmatprep.subr.mxu0 0.0
    %264 = vmatpush1.msra.mxu0 0.0
    %265 = vmatprep.subr.mxu0 0.0
    %266 = vmatpush1.msra.mxu0 0.0
    %267 = vmatprep.subr.mxu0 0.0
    %268 = vmatpush1.msra.mxu0 0.0
    %269 = vmatprep.subr.mxu0 0.0
    %270 = vmatpush1.msra.mxu0 0.0
    %271 = vmatprep.subr.mxu0 0.0
    %272 = vmatpush1.msra.mxu0 0.0
    %273 = vmatprep.subr.mxu0 0.0
    %274 = vmatpush1.msra.mxu0 0.0
    %275 = vmatprep.subr.mxu0 0.0
    %276 = vmatpush1.msra.mxu0 0.0
    %277 = vmatprep.subr.mxu0 0.0
    %278 = vmatpush1.msra.mxu0 0.0
    %279 = vmatprep.subr.mxu0 0.0
    %280 = vmatpush1.msra.mxu0 0.0
    %281 = vmatprep.subr.mxu0 0.0
    %282 = vmatpush1.msra.mxu0 0.0
    %283 = vmatprep.subr.mxu0 0.0
    %284 = vmatpush1.msra.mxu0 0.0
    %285 = vmatprep.subr.mxu0 0.0
    %286 = vmatpush1.msra.mxu0 0.0
    %287 = vmatprep.subr.mxu0 0.0
    %288 = vmatpush1.msra.mxu0 0.0
    %289 = vmatprep.subr.mxu0 0.0
    %290 = vmatpush1.msra.mxu0 0.0
    %291 = vmatprep.subr.mxu0 0.0
    %292 = vmatpush1.msra.mxu0 0.0
    %293 = vmatprep.subr.mxu0 0.0
    %294 = vmatpush1.msra.mxu0 0.0
    %295 = vmatprep.subr.mxu0 0.0
    %296 = vmatpush1.msra.mxu0 0.0
    %297 = vmatprep.subr.mxu0 0.0
    %298 = vmatpush1.msra.mxu0 0.0
    %299 = vmatprep.subr.mxu0 0.0
    %300 = vmatpush1.msra.mxu0 0.0
    %301 = vmatprep.subr.mxu0 0.0
    %302 = vmatpush1.msra.mxu0 0.0
    %303 = vmatprep.subr.mxu0 0.0
    %304 = vmatpush1.msra.mxu0 0.0
    %305 = vmatprep.subr.mxu0 0.0
    %306 = vmatpush1.msra.mxu0 0.0
    %307 = vmatprep.subr.mxu0 0.0
    %308 = vmatpush1.msra.mxu0 0.0
    %309 = vmatprep.subr.mxu0 0.0
    %310 = vmatpush1.msra.mxu0 0.0
    %311 = vmatprep.mubr.f32.mxu0 0.0
    %312 = vmatmul.mubr.f32.gmra.mrb[0].mxu0 %v64
    %v313 = vpop.f32.mrb[0].mxu0
    %v314 = vadd.f32 0.0, %v313
    %v315 = vpop.f32.mrb[0].mxu0
    %316 = vmatprep.mubr.f32.mxu0 0.0
    %317 = vmatmul.mubr.f32.gmra.mrb[0].mxu0 %v67
    %v318 = vpop.f32.mrb[0].mxu0
    %v319 = vadd.f32 0.0, %v318
    %v320 = vpop.f32.mrb[0].mxu0
    %321 = vdwg.mxu0
    %v322 = vmul.f32 %v314, %v314
    %v323 = vmul.f32 %v319, %v319
    %324 = vmatprep.subr.mxu0 0.0
    %325 = vmatpush1.msra.mxu0 %v322
    %326 = vmatprep.subr.mxu0 0.0
    %327 = vmatpush1.msra.mxu0 %v323
    %328 = vmatprep.subr.mxu0 0.0
    %329 = vmatpush1.msra.mxu0 0.0
    %330 = vmatprep.subr.mxu0 0.0
    %331 = vmatpush1.msra.mxu0 0.0
    %332 = vmatprep.subr.mxu0 0.0
    %333 = vmatpush1.msra.mxu0 0.0
    %334 = vmatprep.subr.mxu0 0.0
    %335 = vmatpush1.msra.mxu0 0.0
    %336 = vmatprep.subr.mxu0 0.0
    %337 = vmatpush1.msra.mxu0 0.0
    %338 = vmatprep.subr.mxu0 0.0
    %339 = vmatpush1.msra.mxu0 0.0
    %340 = vmatprep.subr.mxu0 0.0
    %341 = vmatpush1.msra.mxu0 0.0
    %342 = vmatprep.subr.mxu0 0.0
    %343 = vmatpush1.msra.mxu0 0.0
    %344 = vmatprep.subr.mxu0 0.0
    %345 = vmatpush1.msra.mxu0 0.0
    %346 = vmatprep.subr.mxu0 0.0
    %347 = vmatpush1.msra.mxu0 0.0
    %348 = vmatprep.subr.mxu0 0.0
    %349 = vmatpush1.msra.mxu0 0.0
    %350 = vmatprep.subr.mxu0 0.0
    %351 = vmatpush1.msra.mxu0 0.0
    %352 = vmatprep.subr.mxu0 0.0
    %353 = vmatpush1.msra.mxu0 0.0
    %354 = vmatprep.subr.mxu0 0.0
    %355 = vmatpush1.msra.mxu0 0.0
    %356 = vmatprep.subr.mxu0 0.0
    %357 = vmatpush1.msra.mxu0 0.0
    %358 = vmatprep.subr.mxu0 0.0
    %359 = vmatpush1.msra.mxu0 0.0
    %360 = vmatprep.subr.mxu0 0.0
    %361 = vmatpush1.msra.mxu0 0.0
    %362 = vmatprep.subr.mxu0 0.0
    %363 = vmatpush1.msra.mxu0 0.0
    %364 = vmatprep.subr.mxu0 0.0
    %365 = vmatpush1.msra.mxu0 0.0
    %366 = vmatprep.subr.mxu0 0.0
    %367 = vmatpush1.msra.mxu0 0.0
    %368 = vmatprep.subr.mxu0 0.0
    %369 = vmatpush1.msra.mxu0 0.0
    %370 = vmatprep.subr.mxu0 0.0
    %371 = vmatpush1.msra.mxu0 0.0
    %372 = vmatprep.subr.mxu0 0.0
    %373 = vmatpush1.msra.mxu0 0.0
    %374 = vmatprep.subr.mxu0 0.0
    %375 = vmatpush1.msra.mxu0 0.0
    %376 = vmatprep.subr.mxu0 0.0
    %377 = vmatpush1.msra.mxu0 0.0
    %378 = vmatprep.subr.mxu0 0.0
    %379 = vmatpush1.msra.mxu0 0.0
    %380 = vmatprep.subr.mxu0 0.0
    %381 = vmatpush1.msra.mxu0 0.0
    %382 = vmatprep.subr.mxu0 0.0
    %383 = vmatpush1.msra.mxu0 0.0
    %384 = vmatprep.subr.mxu0 0.0
    %385 = vmatpush1.msra.mxu0 0.0
    %386 = vmatprep.subr.mxu0 0.0
    %387 = vmatpush1.msra.mxu0 0.0
    %388 = vmatprep.mubr.f32.mxu0 0.0
    %389 = vmatmul.mubr.f32.gmra.mrb[0].mxu0 %v147
    %v390 = vpop.f32.mrb[0].mxu0
    %v391 = vadd.f32 0.0, %v390
    %v392 = vpop.f32.mrb[0].mxu0
    %393 = vmatprep.mubr.f32.mxu0 0.0
    %394 = vmatmul.mubr.f32.gmra.mrb[0].mxu0 %v150
    %v395 = vpop.f32.mrb[0].mxu0
    %v396 = vadd.f32 0.0, %v395
    %v397 = vpop.f32.mrb[0].mxu0
    %398 = vdwg.mxu0
    %s399 = scalar_lea.vmem %s0, 32
    %v400 = vld [vmem:[%s399] sm:$0xff]
    %v401 = vld [vmem:[%s399 + $0x8] sm:$0xff]
    %v402 = vmul.f32 %v400, %v391
    %v403 = vmul.f32 %v401, %v396
    %v404 = vmul.f32 %v402, %v402
    %v405 = vmul.f32 %v403, %v403
    %v406 = vsel %vm48, %v404, 0.0
    %v407 = vsel %vm48, %v405, 0.0
    %v408 = vadd.f32 %v406, %v407
    %v409 = vrot.slane %v408, 4
    %v410 = vadd.f32 %v408, %v409
    %v411 = vrot.slane %v410, 2
    %v412 = vadd.f32 %v410, %v411
    %v413 = vrot.slane %v412, 1
    %v414 = vadd.f32 %v412, %v413
    %v415 = vmax.f32 %v414, 1e-30
    %v416 = vrsqrt.pop %v415
    %v417 = vmul.f32 %v402, %v416
    %v418 = vmul.f32 %v403, %v416
    %419 = vmatprep.subr.mxu0 0.0
    %420 = vmatpush1.msra.mxu0 %v417
    %421 = vmatprep.subr.mxu0 0.0
    %422 = vmatpush1.msra.mxu0 %v418
    %423 = vmatprep.subr.mxu0 0.0
    %424 = vmatpush1.msra.mxu0 0.0
    %425 = vmatprep.subr.mxu0 0.0
    %426 = vmatpush1.msra.mxu0 0.0
    %427 = vmatprep.subr.mxu0 0.0
    %428 = vmatpush1.msra.mxu0 0.0
    %429 = vmatprep.subr.mxu0 0.0
    %430 = vmatpush1.msra.mxu0 0.0
    %431 = vmatprep.subr.mxu0 0.0
    %432 = vmatpush1.msra.mxu0 0.0
    %433 = vmatprep.subr.mxu0 0.0
    %434 = vmatpush1.msra.mxu0 0.0
    %435 = vmatprep.subr.mxu0 0.0
    %436 = vmatpush1.msra.mxu0 0.0
    %437 = vmatprep.subr.mxu0 0.0
    %438 = vmatpush1.msra.mxu0 0.0
    %439 = vmatprep.subr.mxu0 0.0
    %440 = vmatpush1.msra.mxu0 0.0
    %441 = vmatprep.subr.mxu0 0.0
    %442 = vmatpush1.msra.mxu0 0.0
    %443 = vmatprep.subr.mxu0 0.0
    %444 = vmatpush1.msra.mxu0 0.0
    %445 = vmatprep.subr.mxu0 0.0
    %446 = vmatpush1.msra.mxu0 0.0
    %447 = vmatprep.subr.mxu0 0.0
    %448 = vmatpush1.msra.mxu0 0.0
    %449 = vmatprep.subr.mxu0 0.0
    %450 = vmatpush1.msra.mxu0 0.0
    %451 = vmatprep.subr.mxu0 0.0
    %452 = vmatpush1.msra.mxu0 0.0
    %453 = vmatprep.subr.mxu0 0.0
    %454 = vmatpush1.msra.mxu0 0.0
    %455 = vmatprep.subr.mxu0 0.0
    %456 = vmatpush1.msra.mxu0 0.0
    %457 = vmatprep.subr.mxu0 0.0
    %458 = vmatpush1.msra.mxu0 0.0
    %459 = vmatprep.subr.mxu0 0.0
    %460 = vmatpush1.msra.mxu0 0.0
    %461 = vmatprep.subr.mxu0 0.0
    %462 = vmatpush1.msra.mxu0 0.0
    %463 = vmatprep.subr.mxu0 0.0
    %464 = vmatpush1.msra.mxu0 0.0
    %465 = vmatprep.subr.mxu0 0.0
    %466 = vmatpush1.msra.mxu0 0.0
    %467 = vmatprep.subr.mxu0 0.0
    %468 = vmatpush1.msra.mxu0 0.0
    %469 = vmatprep.subr.mxu0 0.0
    %470 = vmatpush1.msra.mxu0 0.0
    %471 = vmatprep.subr.mxu0 0.0
    %472 = vmatpush1.msra.mxu0 0.0
    %473 = vmatprep.subr.mxu0 0.0
    %474 = vmatpush1.msra.mxu0 0.0
    %475 = vmatprep.subr.mxu0 0.0
    %476 = vmatpush1.msra.mxu0 0.0
    %477 = vmatprep.subr.mxu0 0.0
    %478 = vmatpush1.msra.mxu0 0.0
    %479 = vmatprep.subr.mxu0 0.0
    %480 = vmatpush1.msra.mxu0 0.0
    %481 = vmatprep.subr.mxu0 0.0
    %482 = vmatpush1.msra.mxu0 0.0
    %483 = vmatprep.mubr.f32.mxu0 0.0
    %484 = vmatmul.mubr.f32.gmra.mrb[0].mxu0 %v64
    %v485 = vpop.f32.mrb[0].mxu0
    %v486 = vadd.f32 0.0, %v485
    %v487 = vpop.f32.mrb[0].mxu0
    %488 = vmatprep.mubr.f32.mxu0 0.0
    %489 = vmatmul.mubr.f32.gmra.mrb[0].mxu0 %v67
    %v490 = vpop.f32.mrb[0].mxu0
    %v491 = vadd.f32 0.0, %v490
    %v492 = vpop.f32.mrb[0].mxu0
    %493 = vdwg.mxu0
    %v494 = vmul.f32 %v486, %v486
    %v495 = vmul.f32 %v491, %v491
    %496 = vmatprep.subr.mxu0 0.0
    %497 = vmatpush1.msra.mxu0 %v494
    %498 = vmatprep.subr.mxu0 0.0
    %499 = vmatpush1.msra.mxu0 %v495
    %500 = vmatprep.subr.mxu0 0.0
    %501 = vmatpush1.msra.mxu0 0.0
    %502 = vmatprep.subr.mxu0 0.0
    %503 = vmatpush1.msra.mxu0 0.0
    %504 = vmatprep.subr.mxu0 0.0
    %505 = vmatpush1.msra.mxu0 0.0
    %506 = vmatprep.subr.mxu0 0.0
    %507 = vmatpush1.msra.mxu0 0.0
    %508 = vmatprep.subr.mxu0 0.0
    %509 = vmatpush1.msra.mxu0 0.0
    %510 = vmatprep.subr.mxu0 0.0
    %511 = vmatpush1.msra.mxu0 0.0
    %512 = vmatprep.subr.mxu0 0.0
    %513 = vmatpush1.msra.mxu0 0.0
    %514 = vmatprep.subr.mxu0 0.0
    %515 = vmatpush1.msra.mxu0 0.0
    %516 = vmatprep.subr.mxu0 0.0
    %517 = vmatpush1.msra.mxu0 0.0
    %518 = vmatprep.subr.mxu0 0.0
    %519 = vmatpush1.msra.mxu0 0.0
    %520 = vmatprep.subr.mxu0 0.0
    %521 = vmatpush1.msra.mxu0 0.0
    %522 = vmatprep.subr.mxu0 0.0
    %523 = vmatpush1.msra.mxu0 0.0
    %524 = vmatprep.subr.mxu0 0.0
    %525 = vmatpush1.msra.mxu0 0.0
    %526 = vmatprep.subr.mxu0 0.0
    %527 = vmatpush1.msra.mxu0 0.0
    %528 = vmatprep.subr.mxu0 0.0
    %529 = vmatpush1.msra.mxu0 0.0
    %530 = vmatprep.subr.mxu0 0.0
    %531 = vmatpush1.msra.mxu0 0.0
    %532 = vmatprep.subr.mxu0 0.0
    %533 = vmatpush1.msra.mxu0 0.0
    %534 = vmatprep.subr.mxu0 0.0
    %535 = vmatpush1.msra.mxu0 0.0
    %536 = vmatprep.subr.mxu0 0.0
    %537 = vmatpush1.msra.mxu0 0.0
    %538 = vmatprep.subr.mxu0 0.0
    %539 = vmatpush1.msra.mxu0 0.0
    %540 = vmatprep.subr.mxu0 0.0
    %541 = vmatpush1.msra.mxu0 0.0
    %542 = vmatprep.subr.mxu0 0.0
    %543 = vmatpush1.msra.mxu0 0.0
    %544 = vmatprep.subr.mxu0 0.0
    %545 = vmatpush1.msra.mxu0 0.0
    %546 = vmatprep.subr.mxu0 0.0
    %547 = vmatpush1.msra.mxu0 0.0
    %548 = vmatprep.subr.mxu0 0.0
    %549 = vmatpush1.msra.mxu0 0.0
    %550 = vmatprep.subr.mxu0 0.0
    %551 = vmatpush1.msra.mxu0 0.0
    %552 = vmatprep.subr.mxu0 0.0
    %553 = vmatpush1.msra.mxu0 0.0
    %554 = vmatprep.subr.mxu0 0.0
    %555 = vmatpush1.msra.mxu0 0.0
    %556 = vmatprep.subr.mxu0 0.0
    %557 = vmatpush1.msra.mxu0 0.0
    %558 = vmatprep.subr.mxu0 0.0
    %559 = vmatpush1.msra.mxu0 0.0
    %560 = vmatprep.mubr.f32.mxu0 0.0
    %561 = vmatmul.mubr.f32.gmra.mrb[0].mxu0 %v147
    %v562 = vpop.f32.mrb[0].mxu0
    %v563 = vadd.f32 0.0, %v562
    %v564 = vpop.f32.mrb[0].mxu0
    %565 = vmatprep.mubr.f32.mxu0 0.0
    %566 = vmatmul.mubr.f32.gmra.mrb[0].mxu0 %v150
    %v567 = vpop.f32.mrb[0].mxu0
    %v568 = vadd.f32 0.0, %v567
    %v569 = vpop.f32.mrb[0].mxu0
    %570 = vdwg.mxu0
    %s571 = scalar_lea.vmem %s0, 48
    %v572 = vld [vmem:[%s571] sm:$0xff]
    %v573 = vld [vmem:[%s571 + $0x8] sm:$0xff]
    %v574 = vmul.f32 %v572, %v563
    %v575 = vmul.f32 %v573, %v568
    %v576 = vmul.f32 %v574, %v574
    %v577 = vmul.f32 %v575, %v575
    %v578 = vsel %vm48, %v576, 0.0
    %v579 = vsel %vm48, %v577, 0.0
    %v580 = vadd.f32 %v578, %v579
    %v581 = vrot.slane %v580, 4
    %v582 = vadd.f32 %v580, %v581
    %v583 = vrot.slane %v582, 2
    %v584 = vadd.f32 %v582, %v583
    %v585 = vrot.slane %v584, 1
    %v586 = vadd.f32 %v584, %v585
    %v587 = vmax.f32 %v586, 1e-30
    %v588 = vrsqrt.pop %v587
    %v589 = vmul.f32 %v574, %v588
    %v590 = vmul.f32 %v575, %v588
    %591 = vmatprep.subr.mxu0 0.0
    %592 = vmatpush1.msra.mxu0 %v589
    %593 = vmatprep.subr.mxu0 0.0
    %594 = vmatpush1.msra.mxu0 %v590
    %595 = vmatprep.subr.mxu0 0.0
    %596 = vmatpush1.msra.mxu0 0.0
    %597 = vmatprep.subr.mxu0 0.0
    %598 = vmatpush1.msra.mxu0 0.0
    %599 = vmatprep.subr.mxu0 0.0
    %600 = vmatpush1.msra.mxu0 0.0
    %601 = vmatprep.subr.mxu0 0.0
    %602 = vmatpush1.msra.mxu0 0.0
    %603 = vmatprep.subr.mxu0 0.0
    %604 = vmatpush1.msra.mxu0 0.0
    %605 = vmatprep.subr.mxu0 0.0
    %606 = vmatpush1.msra.mxu0 0.0
    %607 = vmatprep.subr.mxu0 0.0
    %608 = vmatpush1.msra.mxu0 0.0
    %609 = vmatprep.subr.mxu0 0.0
    %610 = vmatpush1.msra.mxu0 0.0
    %611 = vmatprep.subr.mxu0 0.0
    %612 = vmatpush1.msra.mxu0 0.0
    %613 = vmatprep.subr.mxu0 0.0
    %614 = vmatpush1.msra.mxu0 0.0
    %615 = vmatprep.subr.mxu0 0.0
    %616 = vmatpush1.msra.mxu0 0.0
    %617 = vmatprep.subr.mxu0 0.0
    %618 = vmatpush1.msra.mxu0 0.0
    %619 = vmatprep.subr.mxu0 0.0
    %620 = vmatpush1.msra.mxu0 0.0
    %621 = vmatprep.subr.mxu0 0.0
    %622 = vmatpush1.msra.mxu0 0.0
    %623 = vmatprep.subr.mxu0 0.0
    %624 = vmatpush1.msra.mxu0 0.0
    %625 = vmatprep.subr.mxu0 0.0
    %626 = vmatpush1.msra.mxu0 0.0
    %627 = vmatprep.subr.mxu0 0.0
    %628 = vmatpush1.msra.mxu0 0.0
    %629 = vmatprep.subr.mxu0 0.0
    %630 = vmatpush1.msra.mxu0 0.0
    %631 = vmatprep.subr.mxu0 0.0
    %632 = vmatpush1.msra.mxu0 0.0
    %633 = vmatprep.subr.mxu0 0.0
    %634 = vmatpush1.msra.mxu0 0.0
    %635 = vmatprep.subr.mxu0 0.0
    %636 = vmatpush1.msra.mxu0 0.0
    %637 = vmatprep.subr.mxu0 0.0
    %638 = vmatpush1.msra.mxu0 0.0
    %639 = vmatprep.subr.mxu0 0.0
    %640 = vmatpush1.msra.mxu0 0.0
    %641 = vmatprep.subr.mxu0 0.0
    %642 = vmatpush1.msra.mxu0 0.0
    %643 = vmatprep.subr.mxu0 0.0
    %644 = vmatpush1.msra.mxu0 0.0
    %645 = vmatprep.subr.mxu0 0.0
    %646 = vmatpush1.msra.mxu0 0.0
    %647 = vmatprep.subr.mxu0 0.0
    %648 = vmatpush1.msra.mxu0 0.0
    %649 = vmatprep.subr.mxu0 0.0
    %650 = vmatpush1.msra.mxu0 0.0
    %651 = vmatprep.subr.mxu0 0.0
    %652 = vmatpush1.msra.mxu0 0.0
    %653 = vmatprep.subr.mxu0 0.0
    %654 = vmatpush1.msra.mxu0 0.0
    %655 = vmatprep.mubr.f32.mxu0 0.0
    %656 = vmatmul.mubr.f32.gmra.mrb[0].mxu0 %v64
    %v657 = vpop.f32.mrb[0].mxu0
    %v658 = vadd.f32 0.0, %v657
    %v659 = vpop.f32.mrb[0].mxu0
    %660 = vmatprep.mubr.f32.mxu0 0.0
    %661 = vmatmul.mubr.f32.gmra.mrb[0].mxu0 %v67
    %v662 = vpop.f32.mrb[0].mxu0
    %v663 = vadd.f32 0.0, %v662
    %v664 = vpop.f32.mrb[0].mxu0
    %665 = vdwg.mxu0
    %v666 = vmul.f32 %v658, %v658
    %v667 = vmul.f32 %v663, %v663
    %668 = vmatprep.subr.mxu0 0.0
    %669 = vmatpush1.msra.mxu0 %v666
    %670 = vmatprep.subr.mxu0 0.0
    %671 = vmatpush1.msra.mxu0 %v667
    %672 = vmatprep.subr.mxu0 0.0
    %673 = vmatpush1.msra.mxu0 0.0
    %674 = vmatprep.subr.mxu0 0.0
    %675 = vmatpush1.msra.mxu0 0.0
    %676 = vmatprep.subr.mxu0 0.0
    %677 = vmatpush1.msra.mxu0 0.0
    %678 = vmatprep.subr.mxu0 0.0
    %679 = vmatpush1.msra.mxu0 0.0
    %680 = vmatprep.subr.mxu0 0.0
    %681 = vmatpush1.msra.mxu0 0.0
    %682 = vmatprep.subr.mxu0 0.0
    %683 = vmatpush1.msra.mxu0 0.0
    %684 = vmatprep.subr.mxu0 0.0
    %685 = vmatpush1.msra.mxu0 0.0
    %686 = vmatprep.subr.mxu0 0.0
    %687 = vmatpush1.msra.mxu0 0.0
    %688 = vmatprep.subr.mxu0 0.0
    %689 = vmatpush1.msra.mxu0 0.0
    %690 = vmatprep.subr.mxu0 0.0
    %691 = vmatpush1.msra.mxu0 0.0
    %692 = vmatprep.subr.mxu0 0.0
    %693 = vmatpush1.msra.mxu0 0.0
    %694 = vmatprep.subr.mxu0 0.0
    %695 = vmatpush1.msra.mxu0 0.0
    %696 = vmatprep.subr.mxu0 0.0
    %697 = vmatpush1.msra.mxu0 0.0
    %698 = vmatprep.subr.mxu0 0.0
    %699 = vmatpush1.msra.mxu0 0.0
    %700 = vmatprep.subr.mxu0 0.0
    %701 = vmatpush1.msra.mxu0 0.0
    %702 = vmatprep.subr.mxu0 0.0
    %703 = vmatpush1.msra.mxu0 0.0
    %704 = vmatprep.subr.mxu0 0.0
    %705 = vmatpush1.msra.mxu0 0.0
    %706 = vmatprep.subr.mxu0 0.0
    %707 = vmatpush1.msra.mxu0 0.0
    %708 = vmatprep.subr.mxu0 0.0
    %709 = vmatpush1.msra.mxu0 0.0
    %710 = vmatprep.subr.mxu0 0.0
    %711 = vmatpush1.msra.mxu0 0.0
    %712 = vmatprep.subr.mxu0 0.0
    %713 = vmatpush1.msra.mxu0 0.0
    %714 = vmatprep.subr.mxu0 0.0
    %715 = vmatpush1.msra.mxu0 0.0
    %716 = vmatprep.subr.mxu0 0.0
    %717 = vmatpush1.msra.mxu0 0.0
    %718 = vmatprep.subr.mxu0 0.0
    %719 = vmatpush1.msra.mxu0 0.0
    %720 = vmatprep.subr.mxu0 0.0
    %721 = vmatpush1.msra.mxu0 0.0
    %722 = vmatprep.subr.mxu0 0.0
    %723 = vmatpush1.msra.mxu0 0.0
    %724 = vmatprep.subr.mxu0 0.0
    %725 = vmatpush1.msra.mxu0 0.0
    %726 = vmatprep.subr.mxu0 0.0
    %727 = vmatpush1.msra.mxu0 0.0
    %728 = vmatprep.subr.mxu0 0.0
    %729 = vmatpush1.msra.mxu0 0.0
    %730 = vmatprep.subr.mxu0 0.0
    %731 = vmatpush1.msra.mxu0 0.0
    %732 = vmatprep.mubr.f32.mxu0 0.0
    %733 = vmatmul.mubr.f32.gmra.mrb[0].mxu0 %v147
    %v734 = vpop.f32.mrb[0].mxu0
    %v735 = vadd.f32 0.0, %v734
    %v736 = vpop.f32.mrb[0].mxu0
    %737 = vmatprep.mubr.f32.mxu0 0.0
    %738 = vmatmul.mubr.f32.gmra.mrb[0].mxu0 %v150
    %v739 = vpop.f32.mrb[0].mxu0
    %v740 = vadd.f32 0.0, %v739
    %v741 = vpop.f32.mrb[0].mxu0
    %742 = vdwg.mxu0
    %s743 = scalar_lea.vmem %s0, 64
    %v744 = vld [vmem:[%s743] sm:$0xff]
    %v745 = vld [vmem:[%s743 + $0x8] sm:$0xff]
    %v746 = vmul.f32 %v744, %v735
    %v747 = vmul.f32 %v745, %v740
    %v748 = vmul.f32 %v746, %v746
    %v749 = vmul.f32 %v747, %v747
    %v750 = vsel %vm48, %v748, 0.0
    %v751 = vsel %vm48, %v749, 0.0
    %v752 = vadd.f32 %v750, %v751
    %v753 = vrot.slane %v752, 4
    %v754 = vadd.f32 %v752, %v753
    %v755 = vrot.slane %v754, 2
    %v756 = vadd.f32 %v754, %v755
    %v757 = vrot.slane %v756, 1
    %v758 = vadd.f32 %v756, %v757
    %v759 = vmax.f32 %v758, 1e-30
    %v760 = vrsqrt.pop %v759
    %v761 = vmul.f32 %v746, %v760
    %v762 = vmul.f32 %v747, %v760
    %763 = vmatprep.subr.mxu0 0.0
    %764 = vmatpush1.msra.mxu0 %v761
    %765 = vmatprep.subr.mxu0 0.0
    %766 = vmatpush1.msra.mxu0 %v762
    %767 = vmatprep.subr.mxu0 0.0
    %768 = vmatpush1.msra.mxu0 0.0
    %769 = vmatprep.subr.mxu0 0.0
    %770 = vmatpush1.msra.mxu0 0.0
    %771 = vmatprep.subr.mxu0 0.0
    %772 = vmatpush1.msra.mxu0 0.0
    %773 = vmatprep.subr.mxu0 0.0
    %774 = vmatpush1.msra.mxu0 0.0
    %775 = vmatprep.subr.mxu0 0.0
    %776 = vmatpush1.msra.mxu0 0.0
    %777 = vmatprep.subr.mxu0 0.0
    %778 = vmatpush1.msra.mxu0 0.0
    %779 = vmatprep.subr.mxu0 0.0
    %780 = vmatpush1.msra.mxu0 0.0
    %781 = vmatprep.subr.mxu0 0.0
    %782 = vmatpush1.msra.mxu0 0.0
    %783 = vmatprep.subr.mxu0 0.0
    %784 = vmatpush1.msra.mxu0 0.0
    %785 = vmatprep.subr.mxu0 0.0
    %786 = vmatpush1.msra.mxu0 0.0
    %787 = vmatprep.subr.mxu0 0.0
    %788 = vmatpush1.msra.mxu0 0.0
    %789 = vmatprep.subr.mxu0 0.0
    %790 = vmatpush1.msra.mxu0 0.0
    %791 = vmatprep.subr.mxu0 0.0
    %792 = vmatpush1.msra.mxu0 0.0
    %793 = vmatprep.subr.mxu0 0.0
    %794 = vmatpush1.msra.mxu0 0.0
    %795 = vmatprep.subr.mxu0 0.0
    %796 = vmatpush1.msra.mxu0 0.0
    %797 = vmatprep.subr.mxu0 0.0
    %798 = vmatpush1.msra.mxu0 0.0
    %799 = vmatprep.subr.mxu0 0.0
    %800 = vmatpush1.msra.mxu0 0.0
    %801 = vmatprep.subr.mxu0 0.0
    %802 = vmatpush1.msra.mxu0 0.0
    %803 = vmatprep.subr.mxu0 0.0
    %804 = vmatpush1.msra.mxu0 0.0
    %805 = vmatprep.subr.mxu0 0.0
    %806 = vmatpush1.msra.mxu0 0.0
    %807 = vmatprep.subr.mxu0 0.0
    %808 = vmatpush1.msra.mxu0 0.0
    %809 = vmatprep.subr.mxu0 0.0
    %810 = vmatpush1.msra.mxu0 0.0
    %811 = vmatprep.subr.mxu0 0.0
    %812 = vmatpush1.msra.mxu0 0.0
    %813 = vmatprep.subr.mxu0 0.0
    %814 = vmatpush1.msra.mxu0 0.0
    %815 = vmatprep.subr.mxu0 0.0
    %816 = vmatpush1.msra.mxu0 0.0
    %817 = vmatprep.subr.mxu0 0.0
    %818 = vmatpush1.msra.mxu0 0.0
    %819 = vmatprep.subr.mxu0 0.0
    %820 = vmatpush1.msra.mxu0 0.0
    %821 = vmatprep.subr.mxu0 0.0
    %822 = vmatpush1.msra.mxu0 0.0
    %823 = vmatprep.subr.mxu0 0.0
    %824 = vmatpush1.msra.mxu0 0.0
    %825 = vmatprep.subr.mxu0 0.0
    %826 = vmatpush1.msra.mxu0 0.0
    %827 = vmatprep.mubr.f32.mxu0 0.0
    %828 = vmatmul.mubr.f32.gmra.mrb[0].mxu0 %v64
    %v829 = vpop.f32.mrb[0].mxu0
    %v830 = vadd.f32 0.0, %v829
    %v831 = vpop.f32.mrb[0].mxu0
    %832 = vmatprep.mubr.f32.mxu0 0.0
    %833 = vmatmul.mubr.f32.gmra.mrb[0].mxu0 %v67
    %v834 = vpop.f32.mrb[0].mxu0
    %v835 = vadd.f32 0.0, %v834
    %v836 = vpop.f32.mrb[0].mxu0
    %837 = vdwg.mxu0
    %v838 = vmul.f32 %v830, %v830
    %v839 = vmul.f32 %v835, %v835
    %840 = vmatprep.subr.mxu0 0.0
    %841 = vmatpush1.msra.mxu0 %v838
    %842 = vmatprep.subr.mxu0 0.0
    %843 = vmatpush1.msra.mxu0 %v839
    %844 = vmatprep.subr.mxu0 0.0
    %845 = vmatpush1.msra.mxu0 0.0
    %846 = vmatprep.subr.mxu0 0.0
    %847 = vmatpush1.msra.mxu0 0.0
    %848 = vmatprep.subr.mxu0 0.0
    %849 = vmatpush1.msra.mxu0 0.0
    %850 = vmatprep.subr.mxu0 0.0
    %851 = vmatpush1.msra.mxu0 0.0
    %852 = vmatprep.subr.mxu0 0.0
    %853 = vmatpush1.msra.mxu0 0.0
    %854 = vmatprep.subr.mxu0 0.0
    %855 = vmatpush1.msra.mxu0 0.0
    %856 = vmatprep.subr.mxu0 0.0
    %857 = vmatpush1.msra.mxu0 0.0
    %858 = vmatprep.subr.mxu0 0.0
    %859 = vmatpush1.msra.mxu0 0.0
    %860 = vmatprep.subr.mxu0 0.0
    %861 = vmatpush1.msra.mxu0 0.0
    %862 = vmatprep.subr.mxu0 0.0
    %863 = vmatpush1.msra.mxu0 0.0
    %864 = vmatprep.subr.mxu0 0.0
    %865 = vmatpush1.msra.mxu0 0.0
    %866 = vmatprep.subr.mxu0 0.0
    %867 = vmatpush1.msra.mxu0 0.0
    %868 = vmatprep.subr.mxu0 0.0
    %869 = vmatpush1.msra.mxu0 0.0
    %870 = vmatprep.subr.mxu0 0.0
    %871 = vmatpush1.msra.mxu0 0.0
    %872 = vmatprep.subr.mxu0 0.0
    %873 = vmatpush1.msra.mxu0 0.0
    %874 = vmatprep.subr.mxu0 0.0
    %875 = vmatpush1.msra.mxu0 0.0
    %876 = vmatprep.subr.mxu0 0.0
    %877 = vmatpush1.msra.mxu0 0.0
    %878 = vmatprep.subr.mxu0 0.0
    %879 = vmatpush1.msra.mxu0 0.0
    %880 = vmatprep.subr.mxu0 0.0
    %881 = vmatpush1.msra.mxu0 0.0
    %882 = vmatprep.subr.mxu0 0.0
    %883 = vmatpush1.msra.mxu0 0.0
    %884 = vmatprep.subr.mxu0 0.0
    %885 = vmatpush1.msra.mxu0 0.0
    %886 = vmatprep.subr.mxu0 0.0
    %887 = vmatpush1.msra.mxu0 0.0
    %888 = vmatprep.subr.mxu0 0.0
    %889 = vmatpush1.msra.mxu0 0.0
    %890 = vmatprep.subr.mxu0 0.0
    %891 = vmatpush1.msra.mxu0 0.0
    %892 = vmatprep.subr.mxu0 0.0
    %893 = vmatpush1.msra.mxu0 0.0
    %894 = vmatprep.subr.mxu0 0.0
    %895 = vmatpush1.msra.mxu0 0.0
    %896 = vmatprep.subr.mxu0 0.0
    %897 = vmatpush1.msra.mxu0 0.0
    %898 = vmatprep.subr.mxu0 0.0
    %899 = vmatpush1.msra.mxu0 0.0
    %900 = vmatprep.subr.mxu0 0.0
    %901 = vmatpush1.msra.mxu0 0.0
    %902 = vmatprep.subr.mxu0 0.0
    %903 = vmatpush1.msra.mxu0 0.0
    %904 = vmatprep.mubr.f32.mxu0 0.0
    %905 = vmatmul.mubr.f32.gmra.mrb[0].mxu0 %v147
    %v906 = vpop.f32.mrb[0].mxu0
    %v907 = vadd.f32 0.0, %v906
    %v908 = vpop.f32.mrb[0].mxu0
    %909 = vmatprep.mubr.f32.mxu0 0.0
    %910 = vmatmul.mubr.f32.gmra.mrb[0].mxu0 %v150
    %v911 = vpop.f32.mrb[0].mxu0
    %v912 = vadd.f32 0.0, %v911
    %v913 = vpop.f32.mrb[0].mxu0
    %914 = vdwg.mxu0
    %s915 = scalar_lea.vmem %s0, 80
    %v916 = vld [vmem:[%s915] sm:$0xff]
    %v917 = vld [vmem:[%s915 + $0x8] sm:$0xff]
    %v918 = vmul.f32 %v916, %v907
    %v919 = vmul.f32 %v917, %v912
    %v920 = vmul.f32 %v918, %v918
    %v921 = vmul.f32 %v919, %v919
    %v922 = vsel %vm48, %v920, 0.0
    %v923 = vsel %vm48, %v921, 0.0
    %v924 = vadd.f32 %v922, %v923
    %v925 = vrot.slane %v924, 4
    %v926 = vadd.f32 %v924, %v925
    %v927 = vrot.slane %v926, 2
    %v928 = vadd.f32 %v926, %v927
    %v929 = vrot.slane %v928, 1
    %v930 = vadd.f32 %v928, %v929
    %v931 = vmax.f32 %v930, 1e-30
    %v932 = vrsqrt.pop %v931
    %v933 = vmul.f32 %v918, %v932
    %v934 = vmul.f32 %v919, %v932
    %935 = vmatprep.subr.mxu0 0.0
    %936 = vmatpush1.msra.mxu0 %v933
    %937 = vmatprep.subr.mxu0 0.0
    %938 = vmatpush1.msra.mxu0 %v934
    %939 = vmatprep.subr.mxu0 0.0
    %940 = vmatpush1.msra.mxu0 0.0
    %941 = vmatprep.subr.mxu0 0.0
    %942 = vmatpush1.msra.mxu0 0.0
    %943 = vmatprep.subr.mxu0 0.0
    %944 = vmatpush1.msra.mxu0 0.0
    %945 = vmatprep.subr.mxu0 0.0
    %946 = vmatpush1.msra.mxu0 0.0
    %947 = vmatprep.subr.mxu0 0.0
    %948 = vmatpush1.msra.mxu0 0.0
    %949 = vmatprep.subr.mxu0 0.0
    %950 = vmatpush1.msra.mxu0 0.0
    %951 = vmatprep.subr.mxu0 0.0
    %952 = vmatpush1.msra.mxu0 0.0
    %953 = vmatprep.subr.mxu0 0.0
    %954 = vmatpush1.msra.mxu0 0.0
    %955 = vmatprep.subr.mxu0 0.0
    %956 = vmatpush1.msra.mxu0 0.0
    %957 = vmatprep.subr.mxu0 0.0
    %958 = vmatpush1.msra.mxu0 0.0
    %959 = vmatprep.subr.mxu0 0.0
    %960 = vmatpush1.msra.mxu0 0.0
    %961 = vmatprep.subr.mxu0 0.0
    %962 = vmatpush1.msra.mxu0 0.0
    %963 = vmatprep.subr.mxu0 0.0
    %964 = vmatpush1.msra.mxu0 0.0
    %965 = vmatprep.subr.mxu0 0.0
    %966 = vmatpush1.msra.mxu0 0.0
    %967 = vmatprep.subr.mxu0 0.0
    %968 = vmatpush1.msra.mxu0 0.0
    %969 = vmatprep.subr.mxu0 0.0
    %970 = vmatpush1.msra.mxu0 0.0
    %971 = vmatprep.subr.mxu0 0.0
    %972 = vmatpush1.msra.mxu0 0.0
    %973 = vmatprep.subr.mxu0 0.0
    %974 = vmatpush1.msra.mxu0 0.0
    %975 = vmatprep.subr.mxu0 0.0
    %976 = vmatpush1.msra.mxu0 0.0
    %977 = vmatprep.subr.mxu0 0.0
    %978 = vmatpush1.msra.mxu0 0.0
    %979 = vmatprep.subr.mxu0 0.0
    %980 = vmatpush1.msra.mxu0 0.0
    %981 = vmatprep.subr.mxu0 0.0
    %982 = vmatpush1.msra.mxu0 0.0
    %983 = vmatprep.subr.mxu0 0.0
    %984 = vmatpush1.msra.mxu0 0.0
    %985 = vmatprep.subr.mxu0 0.0
    %986 = vmatpush1.msra.mxu0 0.0
    %987 = vmatprep.subr.mxu0 0.0
    %988 = vmatpush1.msra.mxu0 0.0
    %989 = vmatprep.subr.mxu0 0.0
    %990 = vmatpush1.msra.mxu0 0.0
    %991 = vmatprep.subr.mxu0 0.0
    %992 = vmatpush1.msra.mxu0 0.0
    %993 = vmatprep.subr.mxu0 0.0
    %994 = vmatpush1.msra.mxu0 0.0
    %995 = vmatprep.subr.mxu0 0.0
    %996 = vmatpush1.msra.mxu0 0.0
    %997 = vmatprep.subr.mxu0 0.0
    %998 = vmatpush1.msra.mxu0 0.0
    %999 = vmatprep.mubr.f32.mxu0 0.0
    %1000 = vmatmul.mubr.f32.gmra.mrb[0].mxu0 %v64
    %v1001 = vpop.f32.mrb[0].mxu0
    %v1002 = vadd.f32 0.0, %v1001
    %v1003 = vpop.f32.mrb[0].mxu0
    %1004 = vmatprep.mubr.f32.mxu0 0.0
    %1005 = vmatmul.mubr.f32.gmra.mrb[0].mxu0 %v67
    %v1006 = vpop.f32.mrb[0].mxu0
    %v1007 = vadd.f32 0.0, %v1006
    %v1008 = vpop.f32.mrb[0].mxu0
    %1009 = vdwg.mxu0
    %v1010 = vmul.f32 %v1002, %v1002
    %v1011 = vmul.f32 %v1007, %v1007
    %1012 = vmatprep.subr.mxu0 0.0
    %1013 = vmatpush1.msra.mxu0 %v1010
    %1014 = vmatprep.subr.mxu0 0.0
    %1015 = vmatpush1.msra.mxu0 %v1011
    %1016 = vmatprep.subr.mxu0 0.0
    %1017 = vmatpush1.msra.mxu0 0.0
    %1018 = vmatprep.subr.mxu0 0.0
    %1019 = vmatpush1.msra.mxu0 0.0
    %1020 = vmatprep.subr.mxu0 0.0
    %1021 = vmatpush1.msra.mxu0 0.0
    %1022 = vmatprep.subr.mxu0 0.0
    %1023 = vmatpush1.msra.mxu0 0.0
    %1024 = vmatprep.subr.mxu0 0.0
    %1025 = vmatpush1.msra.mxu0 0.0
    %1026 = vmatprep.subr.mxu0 0.0
    %1027 = vmatpush1.msra.mxu0 0.0
    %1028 = vmatprep.subr.mxu0 0.0
    %1029 = vmatpush1.msra.mxu0 0.0
    %1030 = vmatprep.subr.mxu0 0.0
    %1031 = vmatpush1.msra.mxu0 0.0
    %1032 = vmatprep.subr.mxu0 0.0
    %1033 = vmatpush1.msra.mxu0 0.0
    %1034 = vmatprep.subr.mxu0 0.0
    %1035 = vmatpush1.msra.mxu0 0.0
    %1036 = vmatprep.subr.mxu0 0.0
    %1037 = vmatpush1.msra.mxu0 0.0
    %1038 = vmatprep.subr.mxu0 0.0
    %1039 = vmatpush1.msra.mxu0 0.0
    %1040 = vmatprep.subr.mxu0 0.0
    %1041 = vmatpush1.msra.mxu0 0.0
    %1042 = vmatprep.subr.mxu0 0.0
    %1043 = vmatpush1.msra.mxu0 0.0
    %1044 = vmatprep.subr.mxu0 0.0
    %1045 = vmatpush1.msra.mxu0 0.0
    %1046 = vmatprep.subr.mxu0 0.0
    %1047 = vmatpush1.msra.mxu0 0.0
    %1048 = vmatprep.subr.mxu0 0.0
    %1049 = vmatpush1.msra.mxu0 0.0
    %1050 = vmatprep.subr.mxu0 0.0
    %1051 = vmatpush1.msra.mxu0 0.0
    %1052 = vmatprep.subr.mxu0 0.0
    %1053 = vmatpush1.msra.mxu0 0.0
    %1054 = vmatprep.subr.mxu0 0.0
    %1055 = vmatpush1.msra.mxu0 0.0
    %1056 = vmatprep.subr.mxu0 0.0
    %1057 = vmatpush1.msra.mxu0 0.0
    %1058 = vmatprep.subr.mxu0 0.0
    %1059 = vmatpush1.msra.mxu0 0.0
    %1060 = vmatprep.subr.mxu0 0.0
    %1061 = vmatpush1.msra.mxu0 0.0
    %1062 = vmatprep.subr.mxu0 0.0
    %1063 = vmatpush1.msra.mxu0 0.0
    %1064 = vmatprep.subr.mxu0 0.0
    %1065 = vmatpush1.msra.mxu0 0.0
    %1066 = vmatprep.subr.mxu0 0.0
    %1067 = vmatpush1.msra.mxu0 0.0
    %1068 = vmatprep.subr.mxu0 0.0
    %1069 = vmatpush1.msra.mxu0 0.0
    %1070 = vmatprep.subr.mxu0 0.0
    %1071 = vmatpush1.msra.mxu0 0.0
    %1072 = vmatprep.subr.mxu0 0.0
    %1073 = vmatpush1.msra.mxu0 0.0
    %1074 = vmatprep.subr.mxu0 0.0
    %1075 = vmatpush1.msra.mxu0 0.0
    %1076 = vmatprep.mubr.f32.mxu0 0.0
    %1077 = vmatmul.mubr.f32.gmra.mrb[0].mxu0 %v147
    %v1078 = vpop.f32.mrb[0].mxu0
    %v1079 = vadd.f32 0.0, %v1078
    %v1080 = vpop.f32.mrb[0].mxu0
    %1081 = vmatprep.mubr.f32.mxu0 0.0
    %1082 = vmatmul.mubr.f32.gmra.mrb[0].mxu0 %v150
    %v1083 = vpop.f32.mrb[0].mxu0
    %v1084 = vadd.f32 0.0, %v1083
    %v1085 = vpop.f32.mrb[0].mxu0
    %1086 = vdwg.mxu0
    %s1087 = scalar_lea.vmem %s0, 96
    %v1088 = vld [vmem:[%s1087] sm:$0xff]
    %v1089 = vld [vmem:[%s1087 + $0x8] sm:$0xff]
    %v1090 = vmul.f32 %v1088, %v1079
    %v1091 = vmul.f32 %v1089, %v1084
    %v1092 = vmul.f32 %v1090, %v1090
    %v1093 = vmul.f32 %v1091, %v1091
    %v1094 = vsel %vm48, %v1092, 0.0
    %v1095 = vsel %vm48, %v1093, 0.0
    %v1096 = vadd.f32 %v1094, %v1095
    %v1097 = vrot.slane %v1096, 4
    %v1098 = vadd.f32 %v1096, %v1097
    %v1099 = vrot.slane %v1098, 2
    %v1100 = vadd.f32 %v1098, %v1099
    %v1101 = vrot.slane %v1100, 1
    %v1102 = vadd.f32 %v1100, %v1101
    %v1103 = vmax.f32 %v1102, 1e-30
    %v1104 = vrsqrt.pop %v1103
    %v1105 = vmul.f32 %v1090, %v1104
    %v1106 = vmul.f32 %v1091, %v1104
    %1107 = vmatprep.subr.mxu0 0.0
    %1108 = vmatpush1.msra.mxu0 %v1105
    %1109 = vmatprep.subr.mxu0 0.0
    %1110 = vmatpush1.msra.mxu0 %v1106
    %1111 = vmatprep.subr.mxu0 0.0
    %1112 = vmatpush1.msra.mxu0 0.0
    %1113 = vmatprep.subr.mxu0 0.0
    %1114 = vmatpush1.msra.mxu0 0.0
    %1115 = vmatprep.subr.mxu0 0.0
    %1116 = vmatpush1.msra.mxu0 0.0
    %1117 = vmatprep.subr.mxu0 0.0
    %1118 = vmatpush1.msra.mxu0 0.0
    %1119 = vmatprep.subr.mxu0 0.0
    %1120 = vmatpush1.msra.mxu0 0.0
    %1121 = vmatprep.subr.mxu0 0.0
    %1122 = vmatpush1.msra.mxu0 0.0
    %1123 = vmatprep.subr.mxu0 0.0
    %1124 = vmatpush1.msra.mxu0 0.0
    %1125 = vmatprep.subr.mxu0 0.0
    %1126 = vmatpush1.msra.mxu0 0.0
    %1127 = vmatprep.subr.mxu0 0.0
    %1128 = vmatpush1.msra.mxu0 0.0
    %1129 = vmatprep.subr.mxu0 0.0
    %1130 = vmatpush1.msra.mxu0 0.0
    %1131 = vmatprep.subr.mxu0 0.0
    %1132 = vmatpush1.msra.mxu0 0.0
    %1133 = vmatprep.subr.mxu0 0.0
    %1134 = vmatpush1.msra.mxu0 0.0
    %1135 = vmatprep.subr.mxu0 0.0
    %1136 = vmatpush1.msra.mxu0 0.0
    %1137 = vmatprep.subr.mxu0 0.0
    %1138 = vmatpush1.msra.mxu0 0.0
    %1139 = vmatprep.subr.mxu0 0.0
    %1140 = vmatpush1.msra.mxu0 0.0
    %1141 = vmatprep.subr.mxu0 0.0
    %1142 = vmatpush1.msra.mxu0 0.0
    %1143 = vmatprep.subr.mxu0 0.0
    %1144 = vmatpush1.msra.mxu0 0.0
    %1145 = vmatprep.subr.mxu0 0.0
    %1146 = vmatpush1.msra.mxu0 0.0
    %1147 = vmatprep.subr.mxu0 0.0
    %1148 = vmatpush1.msra.mxu0 0.0
    %1149 = vmatprep.subr.mxu0 0.0
    %1150 = vmatpush1.msra.mxu0 0.0
    %1151 = vmatprep.subr.mxu0 0.0
    %1152 = vmatpush1.msra.mxu0 0.0
    %1153 = vmatprep.subr.mxu0 0.0
    %1154 = vmatpush1.msra.mxu0 0.0
    %1155 = vmatprep.subr.mxu0 0.0
    %1156 = vmatpush1.msra.mxu0 0.0
    %1157 = vmatprep.subr.mxu0 0.0
    %1158 = vmatpush1.msra.mxu0 0.0
    %1159 = vmatprep.subr.mxu0 0.0
    %1160 = vmatpush1.msra.mxu0 0.0
    %1161 = vmatprep.subr.mxu0 0.0
    %1162 = vmatpush1.msra.mxu0 0.0
    %1163 = vmatprep.subr.mxu0 0.0
    %1164 = vmatpush1.msra.mxu0 0.0
    %1165 = vmatprep.subr.mxu0 0.0
    %1166 = vmatpush1.msra.mxu0 0.0
    %1167 = vmatprep.subr.mxu0 0.0
    %1168 = vmatpush1.msra.mxu0 0.0
    %1169 = vmatprep.subr.mxu0 0.0
    %1170 = vmatpush1.msra.mxu0 0.0
    %1171 = vmatprep.mubr.f32.mxu0 0.0
    %1172 = vmatmul.mubr.f32.gmra.mrb[0].mxu0 %v64
    %v1173 = vpop.f32.mrb[0].mxu0
    %v1174 = vadd.f32 0.0, %v1173
    %v1175 = vpop.f32.mrb[0].mxu0
    %1176 = vmatprep.mubr.f32.mxu0 0.0
    %1177 = vmatmul.mubr.f32.gmra.mrb[0].mxu0 %v67
    %v1178 = vpop.f32.mrb[0].mxu0
    %v1179 = vadd.f32 0.0, %v1178
    %v1180 = vpop.f32.mrb[0].mxu0
    %1181 = vdwg.mxu0
    %v1182 = vmul.f32 %v1174, %v1174
    %v1183 = vmul.f32 %v1179, %v1179
    %1184 = vmatprep.subr.mxu0 0.0
    %1185 = vmatpush1.msra.mxu0 %v1182
    %1186 = vmatprep.subr.mxu0 0.0
    %1187 = vmatpush1.msra.mxu0 %v1183
    %1188 = vmatprep.subr.mxu0 0.0
    %1189 = vmatpush1.msra.mxu0 0.0
    %1190 = vmatprep.subr.mxu0 0.0
    %1191 = vmatpush1.msra.mxu0 0.0
    %1192 = vmatprep.subr.mxu0 0.0
    %1193 = vmatpush1.msra.mxu0 0.0
    %1194 = vmatprep.subr.mxu0 0.0
    %1195 = vmatpush1.msra.mxu0 0.0
    %1196 = vmatprep.subr.mxu0 0.0
    %1197 = vmatpush1.msra.mxu0 0.0
    %1198 = vmatprep.subr.mxu0 0.0
    %1199 = vmatpush1.msra.mxu0 0.0
    %1200 = vmatprep.subr.mxu0 0.0
    %1201 = vmatpush1.msra.mxu0 0.0
    %1202 = vmatprep.subr.mxu0 0.0
    %1203 = vmatpush1.msra.mxu0 0.0
    %1204 = vmatprep.subr.mxu0 0.0
    %1205 = vmatpush1.msra.mxu0 0.0
    %1206 = vmatprep.subr.mxu0 0.0
    %1207 = vmatpush1.msra.mxu0 0.0
    %1208 = vmatprep.subr.mxu0 0.0
    %1209 = vmatpush1.msra.mxu0 0.0
    %1210 = vmatprep.subr.mxu0 0.0
    %1211 = vmatpush1.msra.mxu0 0.0
    %1212 = vmatprep.subr.mxu0 0.0
    %1213 = vmatpush1.msra.mxu0 0.0
    %1214 = vmatprep.subr.mxu0 0.0
    %1215 = vmatpush1.msra.mxu0 0.0
    %1216 = vmatprep.subr.mxu0 0.0
    %1217 = vmatpush1.msra.mxu0 0.0
    %1218 = vmatprep.subr.mxu0 0.0
    %1219 = vmatpush1.msra.mxu0 0.0
    %1220 = vmatprep.subr.mxu0 0.0
    %1221 = vmatpush1.msra.mxu0 0.0
    %1222 = vmatprep.subr.mxu0 0.0
    %1223 = vmatpush1.msra.mxu0 0.0
    %1224 = vmatprep.subr.mxu0 0.0
    %1225 = vmatpush1.msra.mxu0 0.0
    %1226 = vmatprep.subr.mxu0 0.0
    %1227 = vmatpush1.msra.mxu0 0.0
    %1228 = vmatprep.subr.mxu0 0.0
    %1229 = vmatpush1.msra.mxu0 0.0
    %1230 = vmatprep.subr.mxu0 0.0
    %1231 = vmatpush1.msra.mxu0 0.0
    %1232 = vmatprep.subr.mxu0 0.0
    %1233 = vmatpush1.msra.mxu0 0.0
    %1234 = vmatprep.subr.mxu0 0.0
    %1235 = vmatpush1.msra.mxu0 0.0
    %1236 = vmatprep.subr.mxu0 0.0
    %1237 = vmatpush1.msra.mxu0 0.0
    %1238 = vmatprep.subr.mxu0 0.0
    %1239 = vmatpush1.msra.mxu0 0.0
    %1240 = vmatprep.subr.mxu0 0.0
    %1241 = vmatpush1.msra.mxu0 0.0
    %1242 = vmatprep.subr.mxu0 0.0
    %1243 = vmatpush1.msra.mxu0 0.0
    %1244 = vmatprep.subr.mxu0 0.0
    %1245 = vmatpush1.msra.mxu0 0.0
    %1246 = vmatprep.subr.mxu0 0.0
    %1247 = vmatpush1.msra.mxu0 0.0
    %1248 = vmatprep.mubr.f32.mxu0 0.0
    %1249 = vmatmul.mubr.f32.gmra.mrb[0].mxu0 %v147
    %v1250 = vpop.f32.mrb[0].mxu0
    %v1251 = vadd.f32 0.0, %v1250
    %v1252 = vpop.f32.mrb[0].mxu0
    %1253 = vmatprep.mubr.f32.mxu0 0.0
    %1254 = vmatmul.mubr.f32.gmra.mrb[0].mxu0 %v150
    %v1255 = vpop.f32.mrb[0].mxu0
    %v1256 = vadd.f32 0.0, %v1255
    %v1257 = vpop.f32.mrb[0].mxu0
    %1258 = vdwg.mxu0
    %s1259 = scalar_lea.vmem %s0, 112
    %v1260 = vld [vmem:[%s1259] sm:$0xff]
    %v1261 = vld [vmem:[%s1259 + $0x8] sm:$0xff]
    %v1262 = vmul.f32 %v1260, %v1251
    %v1263 = vmul.f32 %v1261, %v1256
    %v1264 = vmul.f32 %v1262, %v1262
    %v1265 = vmul.f32 %v1263, %v1263
    %v1266 = vsel %vm48, %v1264, 0.0
    %v1267 = vsel %vm48, %v1265, 0.0
    %v1268 = vadd.f32 %v1266, %v1267
    %v1269 = vrot.slane %v1268, 4
    %v1270 = vadd.f32 %v1268, %v1269
    %v1271 = vrot.slane %v1270, 2
    %v1272 = vadd.f32 %v1270, %v1271
    %v1273 = vrot.slane %v1272, 1
    %v1274 = vadd.f32 %v1272, %v1273
    %v1275 = vmax.f32 %v1274, 1e-30
    %v1276 = vrsqrt.pop %v1275
    %v1277 = vmul.f32 %v1262, %v1276
    %v1278 = vmul.f32 %v1263, %v1276
    %1279 = vmatprep.subr.mxu0 0.0
    %1280 = vmatpush1.msra.mxu0 %v1277
    %1281 = vmatprep.subr.mxu0 0.0
    %1282 = vmatpush1.msra.mxu0 %v1278
    %1283 = vmatprep.subr.mxu0 0.0
    %1284 = vmatpush1.msra.mxu0 0.0
    %1285 = vmatprep.subr.mxu0 0.0
    %1286 = vmatpush1.msra.mxu0 0.0
    %1287 = vmatprep.subr.mxu0 0.0
    %1288 = vmatpush1.msra.mxu0 0.0
    %1289 = vmatprep.subr.mxu0 0.0
    %1290 = vmatpush1.msra.mxu0 0.0
    %1291 = vmatprep.subr.mxu0 0.0
    %1292 = vmatpush1.msra.mxu0 0.0
    %1293 = vmatprep.subr.mxu0 0.0
    %1294 = vmatpush1.msra.mxu0 0.0
    %1295 = vmatprep.subr.mxu0 0.0
    %1296 = vmatpush1.msra.mxu0 0.0
    %1297 = vmatprep.subr.mxu0 0.0
    %1298 = vmatpush1.msra.mxu0 0.0
    %1299 = vmatprep.subr.mxu0 0.0
    %1300 = vmatpush1.msra.mxu0 0.0
    %1301 = vmatprep.subr.mxu0 0.0
    %1302 = vmatpush1.msra.mxu0 0.0
    %1303 = vmatprep.subr.mxu0 0.0
    %1304 = vmatpush1.msra.mxu0 0.0
    %1305 = vmatprep.subr.mxu0 0.0
    %1306 = vmatpush1.msra.mxu0 0.0
    %1307 = vmatprep.subr.mxu0 0.0
    %1308 = vmatpush1.msra.mxu0 0.0
    %1309 = vmatprep.subr.mxu0 0.0
    %1310 = vmatpush1.msra.mxu0 0.0
    %1311 = vmatprep.subr.mxu0 0.0
    %1312 = vmatpush1.msra.mxu0 0.0
    %1313 = vmatprep.subr.mxu0 0.0
    %1314 = vmatpush1.msra.mxu0 0.0
    %1315 = vmatprep.subr.mxu0 0.0
    %1316 = vmatpush1.msra.mxu0 0.0
    %1317 = vmatprep.subr.mxu0 0.0
    %1318 = vmatpush1.msra.mxu0 0.0
    %1319 = vmatprep.subr.mxu0 0.0
    %1320 = vmatpush1.msra.mxu0 0.0
    %1321 = vmatprep.subr.mxu0 0.0
    %1322 = vmatpush1.msra.mxu0 0.0
    %1323 = vmatprep.subr.mxu0 0.0
    %1324 = vmatpush1.msra.mxu0 0.0
    %1325 = vmatprep.subr.mxu0 0.0
    %1326 = vmatpush1.msra.mxu0 0.0
    %1327 = vmatprep.subr.mxu0 0.0
    %1328 = vmatpush1.msra.mxu0 0.0
    %1329 = vmatprep.subr.mxu0 0.0
    %1330 = vmatpush1.msra.mxu0 0.0
    %1331 = vmatprep.subr.mxu0 0.0
    %1332 = vmatpush1.msra.mxu0 0.0
    %1333 = vmatprep.subr.mxu0 0.0
    %1334 = vmatpush1.msra.mxu0 0.0
    %1335 = vmatprep.subr.mxu0 0.0
    %1336 = vmatpush1.msra.mxu0 0.0
    %1337 = vmatprep.subr.mxu0 0.0
    %1338 = vmatpush1.msra.mxu0 0.0
    %1339 = vmatprep.subr.mxu0 0.0
    %1340 = vmatpush1.msra.mxu0 0.0
    %1341 = vmatprep.subr.mxu0 0.0
    %1342 = vmatpush1.msra.mxu0 0.0
    %1343 = vmatprep.mubr.f32.mxu0 0.0
    %1344 = vmatmul.mubr.f32.gmra.mrb[0].mxu0 %v64
    %v1345 = vpop.f32.mrb[0].mxu0
    %v1346 = vadd.f32 0.0, %v1345
    %v1347 = vpop.f32.mrb[0].mxu0
    %1348 = vmatprep.mubr.f32.mxu0 0.0
    %1349 = vmatmul.mubr.f32.gmra.mrb[0].mxu0 %v67
    %v1350 = vpop.f32.mrb[0].mxu0
    %v1351 = vadd.f32 0.0, %v1350
    %v1352 = vpop.f32.mrb[0].mxu0
    %1353 = vdwg.mxu0
    %v1354 = vmul.f32 %v1346, %v1346
    %v1355 = vmul.f32 %v1351, %v1351
    %1356 = vmatprep.subr.mxu0 0.0
    %1357 = vmatpush1.msra.mxu0 %v1354
    %1358 = vmatprep.subr.mxu0 0.0
    %1359 = vmatpush1.msra.mxu0 %v1355
    %1360 = vmatprep.subr.mxu0 0.0
    %1361 = vmatpush1.msra.mxu0 0.0
    %1362 = vmatprep.subr.mxu0 0.0
    %1363 = vmatpush1.msra.mxu0 0.0
    %1364 = vmatprep.subr.mxu0 0.0
    %1365 = vmatpush1.msra.mxu0 0.0
    %1366 = vmatprep.subr.mxu0 0.0
    %1367 = vmatpush1.msra.mxu0 0.0
    %1368 = vmatprep.subr.mxu0 0.0
    %1369 = vmatpush1.msra.mxu0 0.0
    %1370 = vmatprep.subr.mxu0 0.0
    %1371 = vmatpush1.msra.mxu0 0.0
    %1372 = vmatprep.subr.mxu0 0.0
    %1373 = vmatpush1.msra.mxu0 0.0
    %1374 = vmatprep.subr.mxu0 0.0
    %1375 = vmatpush1.msra.mxu0 0.0
    %1376 = vmatprep.subr.mxu0 0.0
    %1377 = vmatpush1.msra.mxu0 0.0
    %1378 = vmatprep.subr.mxu0 0.0
    %1379 = vmatpush1.msra.mxu0 0.0
    %1380 = vmatprep.subr.mxu0 0.0
    %1381 = vmatpush1.msra.mxu0 0.0
    %1382 = vmatprep.subr.mxu0 0.0
    %1383 = vmatpush1.msra.mxu0 0.0
    %1384 = vmatprep.subr.mxu0 0.0
    %1385 = vmatpush1.msra.mxu0 0.0
    %1386 = vmatprep.subr.mxu0 0.0
    %1387 = vmatpush1.msra.mxu0 0.0
    %1388 = vmatprep.subr.mxu0 0.0
    %1389 = vmatpush1.msra.mxu0 0.0
    %1390 = vmatprep.subr.mxu0 0.0
    %1391 = vmatpush1.msra.mxu0 0.0
    %1392 = vmatprep.subr.mxu0 0.0
    %1393 = vmatpush1.msra.mxu0 0.0
    %1394 = vmatprep.subr.mxu0 0.0
    %1395 = vmatpush1.msra.mxu0 0.0
    %1396 = vmatprep.subr.mxu0 0.0
    %1397 = vmatpush1.msra.mxu0 0.0
    %1398 = vmatprep.subr.mxu0 0.0
    %1399 = vmatpush1.msra.mxu0 0.0
    %1400 = vmatprep.subr.mxu0 0.0
    %1401 = vmatpush1.msra.mxu0 0.0
    %1402 = vmatprep.subr.mxu0 0.0
    %1403 = vmatpush1.msra.mxu0 0.0
    %1404 = vmatprep.subr.mxu0 0.0
    %1405 = vmatpush1.msra.mxu0 0.0
    %1406 = vmatprep.subr.mxu0 0.0
    %1407 = vmatpush1.msra.mxu0 0.0
    %1408 = vmatprep.subr.mxu0 0.0
    %1409 = vmatpush1.msra.mxu0 0.0
    %1410 = vmatprep.subr.mxu0 0.0
    %1411 = vmatpush1.msra.mxu0 0.0
    %1412 = vmatprep.subr.mxu0 0.0
    %1413 = vmatpush1.msra.mxu0 0.0
    %1414 = vmatprep.subr.mxu0 0.0
    %1415 = vmatpush1.msra.mxu0 0.0
    %1416 = vmatprep.subr.mxu0 0.0
    %1417 = vmatpush1.msra.mxu0 0.0
    %1418 = vmatprep.subr.mxu0 0.0
    %1419 = vmatpush1.msra.mxu0 0.0
    %1420 = vmatprep.mubr.f32.mxu0 0.0
    %1421 = vmatmul.mubr.f32.gmra.mrb[0].mxu0 %v147
    %v1422 = vpop.f32.mrb[0].mxu0
    %v1423 = vadd.f32 0.0, %v1422
    %v1424 = vpop.f32.mrb[0].mxu0
    %1425 = vmatprep.mubr.f32.mxu0 0.0
    %1426 = vmatmul.mubr.f32.gmra.mrb[0].mxu0 %v150
    %v1427 = vpop.f32.mrb[0].mxu0
    %v1428 = vadd.f32 0.0, %v1427
    %v1429 = vpop.f32.mrb[0].mxu0
    %1430 = vdwg.mxu0
    %1431 = vst.msk [vmem:[#allocation2] sm:$0xff] %vm48, %v1423
    %1432 = vst.msk [vmem:[#allocation2 + $0x8] sm:$0xff] %vm48, %v1428
    // Predicated region
    $region22: #{tpu_custom_call.1} parent=1 // pred_check
      %p1433 = pneg %p22
    $region23: #{tpu_custom_call.1} parent=1 // pred_check_branch
      %1435 = sbr.rel (%p1433) target = $region25
    $region24: #{tpu_custom_call.1} parent=1 // pred_region
      %v1436 = vld [vmem:[%s3] sm:$0x1]
      %v1438 = vsel %vm62, %v1436, 0
      %1440 = vmatprep.subr.mxu0 0.0
      %1441 = vmatpush1.msra.mxu0 %v1354
      %1442 = vmatprep.subr.mxu0 0.0
      %1443 = vmatpush1.msra.mxu0 %v1355
      %1444 = vmatprep.subr.mxu0 0.0
      %1445 = vmatpush1.msra.mxu0 0.0
      %1446 = vmatprep.subr.mxu0 0.0
      %1447 = vmatpush1.msra.mxu0 0.0
      %1448 = vmatprep.subr.mxu0 0.0
      %1449 = vmatpush1.msra.mxu0 0.0
      %1450 = vmatprep.subr.mxu0 0.0
      %1451 = vmatpush1.msra.mxu0 0.0
      %1452 = vmatprep.subr.mxu0 0.0
      %1453 = vmatpush1.msra.mxu0 0.0
      %1454 = vmatprep.subr.mxu0 0.0
      %1455 = vmatpush1.msra.mxu0 0.0
      %1456 = vmatprep.subr.mxu0 0.0
      %1457 = vmatpush1.msra.mxu0 0.0
      %1458 = vmatprep.subr.mxu0 0.0
      %1459 = vmatpush1.msra.mxu0 0.0
      %1460 = vmatprep.subr.mxu0 0.0
      %1461 = vmatpush1.msra.mxu0 0.0
      %1462 = vmatprep.subr.mxu0 0.0
      %1463 = vmatpush1.msra.mxu0 0.0
      %1464 = vmatprep.subr.mxu0 0.0
      %1465 = vmatpush1.msra.mxu0 0.0
      %1466 = vmatprep.subr.mxu0 0.0
      %1467 = vmatpush1.msra.mxu0 0.0
      %1468 = vmatprep.subr.mxu0 0.0
      %1469 = vmatpush1.msra.mxu0 0.0
      %1470 = vmatprep.subr.mxu0 0.0
      %1471 = vmatpush1.msra.mxu0 0.0
      %1472 = vmatprep.subr.mxu0 0.0
      %1473 = vmatpush1.msra.mxu0 0.0
      %1474 = vmatprep.subr.mxu0 0.0
      %1475 = vmatpush1.msra.mxu0 0.0
      %1476 = vmatprep.subr.mxu0 0.0
      %1477 = vmatpush1.msra.mxu0 0.0
      %1478 = vmatprep.subr.mxu0 0.0
      %1479 = vmatpush1.msra.mxu0 0.0
      %1480 = vmatprep.subr.mxu0 0.0
      %1481 = vmatpush1.msra.mxu0 0.0
      %1482 = vmatprep.subr.mxu0 0.0
      %1483 = vmatpush1.msra.mxu0 0.0
      %1484 = vmatprep.subr.mxu0 0.0
      %1485 = vmatpush1.msra.mxu0 0.0
      %1486 = vmatprep.subr.mxu0 0.0
      %1487 = vmatpush1.msra.mxu0 0.0
      %1488 = vmatprep.subr.mxu0 0.0
      %1489 = vmatpush1.msra.mxu0 0.0
      %1490 = vmatprep.subr.mxu0 0.0
      %1491 = vmatpush1.msra.mxu0 0.0
      %1492 = vmatprep.subr.mxu0 0.0
      %1493 = vmatpush1.msra.mxu0 0.0
      %1494 = vmatprep.subr.mxu0 0.0
      %1495 = vmatpush1.msra.mxu0 0.0
      %1496 = vmatprep.subr.mxu0 0.0
      %1497 = vmatpush1.msra.mxu0 0.0
      %1498 = vmatprep.subr.mxu0 0.0
      %1499 = vmatpush1.msra.mxu0 0.0
      %1500 = vmatprep.subr.mxu0 0.0
      %1501 = vmatpush1.msra.mxu0 0.0
      %1502 = vmatprep.subr.mxu0 0.0
      %1503 = vmatpush1.msra.mxu0 0.0
      %1504 = vmatprep.mubr.f32.mxu0 0.0
      %1505 = vmatmul.mubr.f32.gmra.mrb[0].mxu0 %v1438
      %v1506 = vpop.f32.mrb[0].mxu0
      %v1507 = vadd.f32 0.0, %v1506
      %v1508 = vpop.f32.mrb[0].mxu0
      %1509 = vdwg.mxu0
      %vm1510 = vcmask 8192
      %1511 = vst.msk [vmem:[#allocation3] sm:$0x1] %vm1510, %v1507
    $region25: #{tpu_custom_call.1} parent=1 // pred_fallthru
      _
    // Predicated region
    $region26: #{tpu_custom_call.1} parent=1 // pred_check
      _
    $region27: #{tpu_custom_call.1} parent=1 // pred_check_branch
      %1513 = sbr.rel (0) target = $region29
    $region28: #{tpu_custom_call.1} parent=1 // pred_region
      %s1515 = ssub.s32 16, 16
      %1516 = vsyncadd [#allocation4], %s1515
      %s1518 = sshll.u32 [#allocation3], 4
      %s1519 = int_to_ptr.vmem [resolvable:$true] %s1518
      %1521 = dma.vmem_to_hbm [thread:$0]  %s1519, 16, %s4, [#allocation4]
    $region29: #{tpu_custom_call.1} parent=1 // pred_fallthru
      _
    // Predicated region
    $region30: #{tpu_custom_call.1} parent=1 // pred_check
      _
    $region31: #{tpu_custom_call.1} parent=1 // pred_check_branch
      %1523 = sbr.rel (0) target = $region33
    $region32: #{tpu_custom_call.1} parent=1 // pred_region
      %1524 = dma.done [#allocation4], 16
    $region33: #{tpu_custom_call.1} parent=1 // pred_fallthru
      _
    %1525 = vsyncpa [#allocation4], 1

</llo_original>
